<compile_context>
chip_gen: v7x
topology: tpu7x:2x2x1
jax: 0.10.0
libtpu: 0.0.40
codegen_flags: <defaults>
</compile_context>

<pallas_src>
import functools

import jax
import jax.numpy as jnp
from jax import lax
from jax.experimental import pallas as pl
from jax.experimental.pallas import tpu as pltpu


def _sigmoid(x):
    return 1.0 / (1.0 + jnp.exp(-x))


def lstm_cell_kernel(xh_ref, c_ref, w_ref, lnh_w_ref, lnh_b_ref,
                     lnc_w_ref, lnc_b_ref, h_out_ref, c_out_ref,
                     *, hidden_size, forget_bias, eps):
    H = hidden_size

    # One fused MXU matmul: [bm, in+H] @ [in+H, 4H] -> [bm, 4H]
    gates = jnp.dot(xh_ref[...], w_ref[...],
                    preferred_element_type=jnp.float32,
                    precision=lax.Precision.HIGHEST)

    # ChunkLayerNorm: LayerNorm over each hidden_size-wide gate chunk (no affine),
    # then the full-width (4H,) affine, which per-chunk is the matching slice.
    normed = []
    for g in range(4):
        sl = slice(g * H, (g + 1) * H)
        gs = gates[:, sl]
        mu = jnp.mean(gs, axis=-1, keepdims=True)
        var = jnp.mean(jnp.square(gs - mu), axis=-1, keepdims=True)
        ln = (gs - mu) * lax.rsqrt(var + eps)
        normed.append(ln * lnh_w_ref[:, sl] + lnh_b_ref[:, sl])

    i_gate = _sigmoid(normed[0])
    f_gate = _sigmoid(normed[1] + forget_bias)
    o_gate = _sigmoid(normed[2])
    c_cand = jnp.tanh(normed[3])

    # TODO(synk): r_dropout on c_cand is applied as identity (eval mode); a
    # training-mode kernel would draw a mask with pltpu.prng_seed/prng_random_bits.
    c_new = f_gate * c_ref[...] + i_gate * c_cand

    # layernorm_c over hidden_size, with affine.
    mu_c = jnp.mean(c_new, axis=-1, keepdims=True)
    var_c = jnp.mean(jnp.square(c_new - mu_c), axis=-1, keepdims=True)
    ln_c = (c_new - mu_c) * lax.rsqrt(var_c + eps)
    ln_c = ln_c * lnc_w_ref[...] + lnc_b_ref[...]

    h_new = o_gate * jnp.tanh(ln_c)

    h_out_ref[...] = h_new.astype(h_out_ref.dtype)
    c_out_ref[...] = c_new.astype(c_out_ref.dtype)


def layer_norm_lstm_cell(x, state, params, *, forget_bias=1.0, eps=1e-5,
                         block_batch=None):
    """x: [B, input_size]; state = (h, c), each [B, hidden]; returns (h', (h', c'))."""
    h, c = state
    w_fused, lnh_w, lnh_b, lnc_w, lnc_b = params
    B, input_size = x.shape
    H = h.shape[-1]
    assert w_fused.shape == (input_size + H, 4 * H)

    # Fused, lane-dense activation slab: a single K-dim for the one in-kernel matmul.
    xh = jnp.concatenate([x, h], axis=1)

    if block_batch is None:
        # Two "parallel" batch tiles when batch is big enough (v7x has 2 TCs).
        block_batch = B // 2 if (B >= 16 and (B // 2) % 8 == 0) else B
    assert B % block_batch == 0
    grid = (B // block_batch,)

    kernel = functools.partial(lstm_cell_kernel, hidden_size=H,
                               forget_bias=forget_bias, eps=eps)

    h_new, c_new = pl.pallas_call(
        kernel,
        out_shape=(jax.ShapeDtypeStruct((B, H), x.dtype),
                   jax.ShapeDtypeStruct((B, H), x.dtype)),
        grid_spec=pltpu.PrefetchScalarGridSpec(
            num_scalar_prefetch=0,
            grid=grid,
            in_specs=[
                pl.BlockSpec((block_batch, input_size + H), lambda i: (i, 0)),  # [x|h]
                pl.BlockSpec((block_batch, H), lambda i: (i, 0)),               # c
                pl.BlockSpec((input_size + H, 4 * H), lambda i: (0, 0)),        # W_fused
                pl.BlockSpec((1, 4 * H), lambda i: (0, 0)),                     # ln_h weight
                pl.BlockSpec((1, 4 * H), lambda i: (0, 0)),                     # ln_h bias
                pl.BlockSpec((1, H), lambda i: (0, 0)),                         # ln_c weight
                pl.BlockSpec((1, H), lambda i: (0, 0)),                         # ln_c bias
            ],
            out_specs=(pl.BlockSpec((block_batch, H), lambda i: (i, 0)),
                       pl.BlockSpec((block_batch, H), lambda i: (i, 0))),
        ),
        compiler_params=pltpu.CompilerParams(dimension_semantics=("parallel",)),
    )(xh, c, w_fused, lnh_w, lnh_b, lnc_w, lnc_b)

    return h_new, (h_new, c_new)


def init_params(key, input_size, hidden_size, dtype=jnp.float32):
    """Weights stored pre-transposed ([in, 4H]) and pre-fused along K."""
    H = hidden_size
    k1, k2, k3, k4 = jax.random.split(key, 4)
    w_ih_t = (jax.random.normal(k1, (input_size, 4 * H)) /
              jnp.sqrt(jnp.float32(input_size))).astype(dtype)
    w_hh_t = (jax.random.normal(k2, (H, 4 * H)) /
              jnp.sqrt(jnp.float32(H))).astype(dtype)
    w_fused = jnp.concatenate([w_ih_t, w_hh_t], axis=0)      # [in+H, 4H]
    # reset_parameters() gives ones/zeros; perturb slightly so the affine path
    # is actually exercised by the correctness check.
    lnh_w = (1.0 + 0.1 * jax.random.normal(k3, (1, 4 * H))).astype(dtype)
    lnh_b = (0.1 * jax.random.normal(k4, (1, 4 * H))).astype(dtype)
    lnc_w = jnp.ones((1, H), dtype)
    lnc_b = jnp.zeros((1, H), dtype)
    return w_fused, lnh_w, lnh_b, lnc_w, lnc_b


def layer_norm_lstm_cell_ref(x, state, params, *, forget_bias=1.0, eps=1e-5):
    h, c = state
    w_fused, lnh_w, lnh_b, lnc_w, lnc_b = params
    H = h.shape[-1]
    xh = jnp.concatenate([x, h], axis=1)
    gates = jnp.dot(xh, w_fused, precision=lax.Precision.HIGHEST)
    B = gates.shape[0]
    g = gates.reshape(B, 4, H)
    mu = g.mean(-1, keepdims=True)
    var = jnp.square(g - mu).mean(-1, keepdims=True)
    g = (g - mu) / jnp.sqrt(var + eps)
    g = g.reshape(B, 4 * H) * lnh_w.reshape(-1) + lnh_b.reshape(-1)
    i_g, f_g, o_g, c_cand = jnp.split(g, 4, axis=1)
    i_g = jax.nn.sigmoid(i_g)
    f_g = jax.nn.sigmoid(f_g + forget_bias)
    o_g = jax.nn.sigmoid(o_g)
    c_cand = jnp.tanh(c_cand)
    c_new = f_g * c + i_g * c_cand
    mu_c = c_new.mean(-1, keepdims=True)
    var_c = jnp.square(c_new - mu_c).mean(-1, keepdims=True)
    ln_c = (c_new - mu_c) / jnp.sqrt(var_c + eps) * lnc_w.reshape(-1) + lnc_b.reshape(-1)
    h_new = o_g * jnp.tanh(ln_c)
    return h_new, (h_new, c_new)


if __name__ == "__main__":
    B, input_size, hidden_size = 8, 64, 128

    key = jax.random.PRNGKey(0)
    kx, kh, kc, kw = jax.random.split(key, 4)
    x = jax.random.normal(kx, (B, input_size), dtype=jnp.float32)
    h0 = jax.random.normal(kh, (B, hidden_size), dtype=jnp.float32)
    c0 = jax.random.normal(kc, (B, hidden_size), dtype=jnp.float32)
    params = init_params(kw, input_size, hidden_size)

    h1, (h1_s, c1) = layer_norm_lstm_cell(x, (h0, c0), params)
    h1 = jax.block_until_ready(h1)
    c1 = jax.block_until_ready(c1)

    h_ref, (_, c_ref) = layer_norm_lstm_cell_ref(x, (h0, c0), params)
    assert h1.shape == (B, hidden_size) and c1.shape == (B, hidden_size)
    assert jnp.allclose(h1, h_ref, atol=1e-4, rtol=1e-4), "h mismatch vs reference"
    assert jnp.allclose(c1, c_ref, atol=1e-4, rtol=1e-4), "c mismatch vs reference"

    print("KERNEL_OK")
</pallas_src>

<mosaic_0001>
module attributes {stable_mosaic.version = 11 : i64} {
  func.func @lstm_cell_kernel(%arg0: i32, %arg1: memref<8x192xf32, #tpu.memory_space<vmem>>, %arg2: memref<8x128xf32, #tpu.memory_space<vmem>>, %arg3: memref<192x512xf32, #tpu.memory_space<vmem>>, %arg4: memref<1x512xf32, #tpu.memory_space<vmem>>, %arg5: memref<1x512xf32, #tpu.memory_space<vmem>>, %arg6: memref<1x128xf32, #tpu.memory_space<vmem>>, %arg7: memref<1x128xf32, #tpu.memory_space<vmem>>, %arg8: memref<8x128xf32, #tpu.memory_space<vmem>>, %arg9: memref<8x128xf32, #tpu.memory_space<vmem>>) attributes {dimension_semantics = [#tpu.dimension_semantics<parallel>], iteration_bounds = array<i64: 1>, scalar_prefetch = 0 : i64, scratch_operands = 0 : i64, tpu.core_type = #tpu.core_type<tc>, window_params = [{transform_indices = @transform_0, window_bounds = array<i64: 8, 192>}, {transform_indices = @transform_1, window_bounds = array<i64: 8, 128>}, {pipeline_mode = #tpu.pipeline_mode<synchronous>, transform_indices = @transform_2, window_bounds = array<i64: 192, 512>}, {pipeline_mode = #tpu.pipeline_mode<synchronous>, transform_indices = @transform_3, window_bounds = array<i64: 1, 512>}, {pipeline_mode = #tpu.pipeline_mode<synchronous>, transform_indices = @transform_4, window_bounds = array<i64: 1, 512>}, {pipeline_mode = #tpu.pipeline_mode<synchronous>, transform_indices = @transform_5, window_bounds = array<i64: 1, 128>}, {pipeline_mode = #tpu.pipeline_mode<synchronous>, transform_indices = @transform_6, window_bounds = array<i64: 1, 128>}, {transform_indices = @transform_7, window_bounds = array<i64: 8, 128>}, {transform_indices = @transform_8, window_bounds = array<i64: 8, 128>}]} {
    %c0 = arith.constant 0 : index
    %c0_0 = arith.constant 0 : index
    %0 = vector.load %arg1[%c0, %c0_0] : memref<8x192xf32, #tpu.memory_space<vmem>>, vector<8x192xf32>
    %c0_1 = arith.constant 0 : index
    %c0_2 = arith.constant 0 : index
    %1 = vector.load %arg3[%c0_1, %c0_2] : memref<192x512xf32, #tpu.memory_space<vmem>>, vector<192x512xf32>
    %cst = arith.constant dense<0.000000e+00> : vector<8x512xf32>
    %2 = tpu.matmul %0, %1, %cst {dimension_numbers = #tpu.dot_dimension_numbers<[1], [0], [0], [1], [0, 0, 1, 1], [], []>, precision = #tpu.contract_precision<fp32>} : vector<8x192xf32>, vector<192x512xf32>, vector<8x512xf32> -> vector<8x512xf32>
    %3 = vector.extract_strided_slice %2 {offsets = [0, 0], sizes = [8, 128], strides = [1, 1]} : vector<8x512xf32> to vector<8x128xf32>
    %cst_3 = arith.constant dense<0.000000e+00> : vector<8xf32>
    %4 = vector.multi_reduction <add>, %3, %cst_3 [1] : vector<8x128xf32> to vector<8xf32>
    %5 = vector.shape_cast %4 : vector<8xf32> to vector<8x1xf32>
    %cst_4 = arith.constant 1.280000e+02 : f32
    %6 = vector.broadcast %cst_4 : f32 to vector<8x1xf32>
    %7 = arith.divf %5, %6 : vector<8x1xf32>
    %8 = vector.broadcast %7 : vector<8x1xf32> to vector<8x128xf32>
    %9 = arith.subf %3, %8 : vector<8x128xf32>
    %10 = arith.mulf %9, %9 : vector<8x128xf32>
    %cst_5 = arith.constant dense<0.000000e+00> : vector<8xf32>
    %11 = vector.multi_reduction <add>, %10, %cst_5 [1] : vector<8x128xf32> to vector<8xf32>
    %12 = vector.shape_cast %11 : vector<8xf32> to vector<8x1xf32>
    %cst_6 = arith.constant 1.280000e+02 : f32
    %13 = vector.broadcast %cst_6 : f32 to vector<8x1xf32>
    %14 = arith.divf %12, %13 : vector<8x1xf32>
    %15 = vector.broadcast %7 : vector<8x1xf32> to vector<8x128xf32>
    %16 = arith.subf %3, %15 : vector<8x128xf32>
    %cst_7 = arith.constant 9.99999974E-6 : f32
    %17 = vector.broadcast %cst_7 : f32 to vector<8x1xf32>
    %18 = arith.addf %14, %17 : vector<8x1xf32>
    %19 = math.rsqrt %18 : vector<8x1xf32>
    %20 = vector.broadcast %19 : vector<8x1xf32> to vector<8x128xf32>
    %21 = arith.mulf %16, %20 : vector<8x128xf32>
    %c0_8 = arith.constant 0 : index
    %c0_9 = arith.constant 0 : index
    %22 = vector.load %arg4[%c0_8, %c0_9] : memref<1x512xf32, #tpu.memory_space<vmem>>, vector<1x128xf32>
    %23 = vector.broadcast %22 : vector<1x128xf32> to vector<8x128xf32>
    %24 = arith.mulf %21, %23 : vector<8x128xf32>
    %c0_10 = arith.constant 0 : index
    %c0_11 = arith.constant 0 : index
    %25 = vector.load %arg5[%c0_10, %c0_11] : memref<1x512xf32, #tpu.memory_space<vmem>>, vector<1x128xf32>
    %26 = vector.broadcast %25 : vector<1x128xf32> to vector<8x128xf32>
    %27 = arith.addf %24, %26 : vector<8x128xf32>
    %28 = vector.extract_strided_slice %2 {offsets = [0, 128], sizes = [8, 128], strides = [1, 1]} : vector<8x512xf32> to vector<8x128xf32>
    %cst_12 = arith.constant dense<0.000000e+00> : vector<8xf32>
    %29 = vector.multi_reduction <add>, %28, %cst_12 [1] : vector<8x128xf32> to vector<8xf32>
    %30 = vector.shape_cast %29 : vector<8xf32> to vector<8x1xf32>
    %cst_13 = arith.constant 1.280000e+02 : f32
    %31 = vector.broadcast %cst_13 : f32 to vector<8x1xf32>
    %32 = arith.divf %30, %31 : vector<8x1xf32>
    %33 = vector.broadcast %32 : vector<8x1xf32> to vector<8x128xf32>
    %34 = arith.subf %28, %33 : vector<8x128xf32>
    %35 = arith.mulf %34, %34 : vector<8x128xf32>
    %cst_14 = arith.constant dense<0.000000e+00> : vector<8xf32>
    %36 = vector.multi_reduction <add>, %35, %cst_14 [1] : vector<8x128xf32> to vector<8xf32>
    %37 = vector.shape_cast %36 : vector<8xf32> to vector<8x1xf32>
    %cst_15 = arith.constant 1.280000e+02 : f32
    %38 = vector.broadcast %cst_15 : f32 to vector<8x1xf32>
    %39 = arith.divf %37, %38 : vector<8x1xf32>
    %40 = vector.broadcast %32 : vector<8x1xf32> to vector<8x128xf32>
    %41 = arith.subf %28, %40 : vector<8x128xf32>
    %cst_16 = arith.constant 9.99999974E-6 : f32
    %42 = vector.broadcast %cst_16 : f32 to vector<8x1xf32>
    %43 = arith.addf %39, %42 : vector<8x1xf32>
    %44 = math.rsqrt %43 : vector<8x1xf32>
    %45 = vector.broadcast %44 : vector<8x1xf32> to vector<8x128xf32>
    %46 = arith.mulf %41, %45 : vector<8x128xf32>
    %c0_17 = arith.constant 0 : index
    %c128 = arith.constant 128 : index
    %47 = vector.load %arg4[%c0_17, %c128] : memref<1x512xf32, #tpu.memory_space<vmem>>, vector<1x128xf32>
    %48 = vector.broadcast %47 : vector<1x128xf32> to vector<8x128xf32>
    %49 = arith.mulf %46, %48 : vector<8x128xf32>
    %c0_18 = arith.constant 0 : index
    %c128_19 = arith.constant 128 : index
    %50 = vector.load %arg5[%c0_18, %c128_19] : memref<1x512xf32, #tpu.memory_space<vmem>>, vector<1x128xf32>
    %51 = vector.broadcast %50 : vector<1x128xf32> to vector<8x128xf32>
    %52 = arith.addf %49, %51 : vector<8x128xf32>
    %53 = vector.extract_strided_slice %2 {offsets = [0, 256], sizes = [8, 128], strides = [1, 1]} : vector<8x512xf32> to vector<8x128xf32>
    %cst_20 = arith.constant dense<0.000000e+00> : vector<8xf32>
    %54 = vector.multi_reduction <add>, %53, %cst_20 [1] : vector<8x128xf32> to vector<8xf32>
    %55 = vector.shape_cast %54 : vector<8xf32> to vector<8x1xf32>
    %cst_21 = arith.constant 1.280000e+02 : f32
    %56 = vector.broadcast %cst_21 : f32 to vector<8x1xf32>
    %57 = arith.divf %55, %56 : vector<8x1xf32>
    %58 = vector.broadcast %57 : vector<8x1xf32> to vector<8x128xf32>
    %59 = arith.subf %53, %58 : vector<8x128xf32>
    %60 = arith.mulf %59, %59 : vector<8x128xf32>
    %cst_22 = arith.constant dense<0.000000e+00> : vector<8xf32>
    %61 = vector.multi_reduction <add>, %60, %cst_22 [1] : vector<8x128xf32> to vector<8xf32>
    %62 = vector.shape_cast %61 : vector<8xf32> to vector<8x1xf32>
    %cst_23 = arith.constant 1.280000e+02 : f32
    %63 = vector.broadcast %cst_23 : f32 to vector<8x1xf32>
    %64 = arith.divf %62, %63 : vector<8x1xf32>
    %65 = vector.broadcast %57 : vector<8x1xf32> to vector<8x128xf32>
    %66 = arith.subf %53, %65 : vector<8x128xf32>
    %cst_24 = arith.constant 9.99999974E-6 : f32
    %67 = vector.broadcast %cst_24 : f32 to vector<8x1xf32>
    %68 = arith.addf %64, %67 : vector<8x1xf32>
    %69 = math.rsqrt %68 : vector<8x1xf32>
    %70 = vector.broadcast %69 : vector<8x1xf32> to vector<8x128xf32>
    %71 = arith.mulf %66, %70 : vector<8x128xf32>
    %c0_25 = arith.constant 0 : index
    %c256 = arith.constant 256 : index
    %72 = vector.load %arg4[%c0_25, %c256] : memref<1x512xf32, #tpu.memory_space<vmem>>, vector<1x128xf32>
    %73 = vector.broadcast %72 : vector<1x128xf32> to vector<8x128xf32>
    %74 = arith.mulf %71, %73 : vector<8x128xf32>
    %c0_26 = arith.constant 0 : index
    %c256_27 = arith.constant 256 : index
    %75 = vector.load %arg5[%c0_26, %c256_27] : memref<1x512xf32, #tpu.memory_space<vmem>>, vector<1x128xf32>
    %76 = vector.broadcast %75 : vector<1x128xf32> to vector<8x128xf32>
    %77 = arith.addf %74, %76 : vector<8x128xf32>
    %78 = vector.extract_strided_slice %2 {offsets = [0, 384], sizes = [8, 128], strides = [1, 1]} : vector<8x512xf32> to vector<8x128xf32>
    %cst_28 = arith.constant dense<0.000000e+00> : vector<8xf32>
    %79 = vector.multi_reduction <add>, %78, %cst_28 [1] : vector<8x128xf32> to vector<8xf32>
    %80 = vector.shape_cast %79 : vector<8xf32> to vector<8x1xf32>
    %cst_29 = arith.constant 1.280000e+02 : f32
    %81 = vector.broadcast %cst_29 : f32 to vector<8x1xf32>
    %82 = arith.divf %80, %81 : vector<8x1xf32>
    %83 = vector.broadcast %82 : vector<8x1xf32> to vector<8x128xf32>
    %84 = arith.subf %78, %83 : vector<8x128xf32>
    %85 = arith.mulf %84, %84 : vector<8x128xf32>
    %cst_30 = arith.constant dense<0.000000e+00> : vector<8xf32>
    %86 = vector.multi_reduction <add>, %85, %cst_30 [1] : vector<8x128xf32> to vector<8xf32>
    %87 = vector.shape_cast %86 : vector<8xf32> to vector<8x1xf32>
    %cst_31 = arith.constant 1.280000e+02 : f32
    %88 = vector.broadcast %cst_31 : f32 to vector<8x1xf32>
    %89 = arith.divf %87, %88 : vector<8x1xf32>
    %90 = vector.broadcast %82 : vector<8x1xf32> to vector<8x128xf32>
    %91 = arith.subf %78, %90 : vector<8x128xf32>
    %cst_32 = arith.constant 9.99999974E-6 : f32
    %92 = vector.broadcast %cst_32 : f32 to vector<8x1xf32>
    %93 = arith.addf %89, %92 : vector<8x1xf32>
    %94 = math.rsqrt %93 : vector<8x1xf32>
    %95 = vector.broadcast %94 : vector<8x1xf32> to vector<8x128xf32>
    %96 = arith.mulf %91, %95 : vector<8x128xf32>
    %c0_33 = arith.constant 0 : index
    %c384 = arith.constant 384 : index
    %97 = vector.load %arg4[%c0_33, %c384] : memref<1x512xf32, #tpu.memory_space<vmem>>, vector<1x128xf32>
    %98 = vector.broadcast %97 : vector<1x128xf32> to vector<8x128xf32>
    %99 = arith.mulf %96, %98 : vector<8x128xf32>
    %c0_34 = arith.constant 0 : index
    %c384_35 = arith.constant 384 : index
    %100 = vector.load %arg5[%c0_34, %c384_35] : memref<1x512xf32, #tpu.memory_space<vmem>>, vector<1x128xf32>
    %101 = vector.broadcast %100 : vector<1x128xf32> to vector<8x128xf32>
    %102 = arith.addf %99, %101 : vector<8x128xf32>
    %cst_36 = arith.constant 0.000000e+00 : f32
    %103 = vector.broadcast %cst_36 : f32 to vector<8x128xf32>
    %104 = arith.subf %103, %27 : vector<8x128xf32>
    %105 = math.exp %104 : vector<8x128xf32>
    %cst_37 = arith.constant 1.000000e+00 : f32
    %106 = vector.broadcast %cst_37 : f32 to vector<8x128xf32>
    %107 = arith.addf %106, %105 : vector<8x128xf32>
    %cst_38 = arith.constant 1.000000e+00 : f32
    %108 = vector.broadcast %cst_38 : f32 to vector<8x128xf32>
    %109 = arith.divf %108, %107 : vector<8x128xf32>
    %cst_39 = arith.constant 1.000000e+00 : f32
    %110 = vector.broadcast %cst_39 : f32 to vector<8x128xf32>
    %111 = arith.addf %52, %110 : vector<8x128xf32>
    %cst_40 = arith.constant 0.000000e+00 : f32
    %112 = vector.broadcast %cst_40 : f32 to vector<8x128xf32>
    %113 = arith.subf %112, %111 : vector<8x128xf32>
    %114 = math.exp %113 : vector<8x128xf32>
    %cst_41 = arith.constant 1.000000e+00 : f32
    %115 = vector.broadcast %cst_41 : f32 to vector<8x128xf32>
    %116 = arith.addf %115, %114 : vector<8x128xf32>
    %cst_42 = arith.constant 1.000000e+00 : f32
    %117 = vector.broadcast %cst_42 : f32 to vector<8x128xf32>
    %118 = arith.divf %117, %116 : vector<8x128xf32>
    %cst_43 = arith.constant 0.000000e+00 : f32
    %119 = vector.broadcast %cst_43 : f32 to vector<8x128xf32>
    %120 = arith.subf %119, %77 : vector<8x128xf32>
    %121 = math.exp %120 : vector<8x128xf32>
    %cst_44 = arith.constant 1.000000e+00 : f32
    %122 = vector.broadcast %cst_44 : f32 to vector<8x128xf32>
    %123 = arith.addf %122, %121 : vector<8x128xf32>
    %cst_45 = arith.constant 1.000000e+00 : f32
    %124 = vector.broadcast %cst_45 : f32 to vector<8x128xf32>
    %125 = arith.divf %124, %123 : vector<8x128xf32>
    %126 = math.tanh %102 : vector<8x128xf32>
    %c0_46 = arith.constant 0 : index
    %c0_47 = arith.constant 0 : index
    %127 = vector.load %arg2[%c0_46, %c0_47] : memref<8x128xf32, #tpu.memory_space<vmem>>, vector<8x128xf32>
    %128 = arith.mulf %118, %127 : vector<8x128xf32>
    %129 = arith.mulf %109, %126 : vector<8x128xf32>
    %130 = arith.addf %128, %129 : vector<8x128xf32>
    %cst_48 = arith.constant dense<0.000000e+00> : vector<8xf32>
    %131 = vector.multi_reduction <add>, %130, %cst_48 [1] : vector<8x128xf32> to vector<8xf32>
    %132 = vector.shape_cast %131 : vector<8xf32> to vector<8x1xf32>
    %cst_49 = arith.constant 1.280000e+02 : f32
    %133 = vector.broadcast %cst_49 : f32 to vector<8x1xf32>
    %134 = arith.divf %132, %133 : vector<8x1xf32>
    %135 = vector.broadcast %134 : vector<8x1xf32> to vector<8x128xf32>
    %136 = arith.subf %130, %135 : vector<8x128xf32>
    %137 = arith.mulf %136, %136 : vector<8x128xf32>
    %cst_50 = arith.constant dense<0.000000e+00> : vector<8xf32>
    %138 = vector.multi_reduction <add>, %137, %cst_50 [1] : vector<8x128xf32> to vector<8xf32>
    %139 = vector.shape_cast %138 : vector<8xf32> to vector<8x1xf32>
    %cst_51 = arith.constant 1.280000e+02 : f32
    %140 = vector.broadcast %cst_51 : f32 to vector<8x1xf32>
    %141 = arith.divf %139, %140 : vector<8x1xf32>
    %142 = vector.broadcast %134 : vector<8x1xf32> to vector<8x128xf32>
    %143 = arith.subf %130, %142 : vector<8x128xf32>
    %cst_52 = arith.constant 9.99999974E-6 : f32
    %144 = vector.broadcast %cst_52 : f32 to vector<8x1xf32>
    %145 = arith.addf %141, %144 : vector<8x1xf32>
    %146 = math.rsqrt %145 : vector<8x1xf32>
    %147 = vector.broadcast %146 : vector<8x1xf32> to vector<8x128xf32>
    %148 = arith.mulf %143, %147 : vector<8x128xf32>
    %c0_53 = arith.constant 0 : index
    %c0_54 = arith.constant 0 : index
    %149 = vector.load %arg6[%c0_53, %c0_54] : memref<1x128xf32, #tpu.memory_space<vmem>>, vector<1x128xf32>
    %150 = vector.broadcast %149 : vector<1x128xf32> to vector<8x128xf32>
    %151 = arith.mulf %148, %150 : vector<8x128xf32>
    %c0_55 = arith.constant 0 : index
    %c0_56 = arith.constant 0 : index
    %152 = vector.load %arg7[%c0_55, %c0_56] : memref<1x128xf32, #tpu.memory_space<vmem>>, vector<1x128xf32>
    %153 = vector.broadcast %152 : vector<1x128xf32> to vector<8x128xf32>
    %154 = arith.addf %151, %153 : vector<8x128xf32>
    %155 = math.tanh %154 : vector<8x128xf32>
    %156 = arith.mulf %125, %155 : vector<8x128xf32>
    %c0_57 = arith.constant 0 : index
    %c0_58 = arith.constant 0 : index
    %157 = vector.load %arg8[%c0_57, %c0_58] : memref<8x128xf32, #tpu.memory_space<vmem>>, vector<8x128xf32>
    tpu.vector_store %arg8[%c0_57, %c0_58], %156 {strides = array<i32>} : memref<8x128xf32, #tpu.memory_space<vmem>>, vector<8x128xf32>,
    %c0_59 = arith.constant 0 : index
    %c0_60 = arith.constant 0 : index
    %158 = vector.load %arg9[%c0_59, %c0_60] : memref<8x128xf32, #tpu.memory_space<vmem>>, vector<8x128xf32>
    tpu.vector_store %arg9[%c0_59, %c0_60], %130 {strides = array<i32>} : memref<8x128xf32, #tpu.memory_space<vmem>>, vector<8x128xf32>,
    return
  }
  func.func @transform_0(%arg0: i32) -> (i32, i32) {
    %c0_i32 = arith.constant 0 : i32
    %c0_i32_0 = arith.constant 0 : i32
    return %arg0, %c0_i32 : i32, i32
  }
  func.func @transform_1(%arg0: i32) -> (i32, i32) {
    %c0_i32 = arith.constant 0 : i32
    %c0_i32_0 = arith.constant 0 : i32
    return %arg0, %c0_i32 : i32, i32
  }
  func.func @transform_2(%arg0: i32) -> (i32, i32) {
    %c0_i32 = arith.constant 0 : i32
    %c0_i32_0 = arith.constant 0 : i32
    %c0_i32_1 = arith.constant 0 : i32
    return %c0_i32, %c0_i32_0 : i32, i32
  }
  func.func @transform_3(%arg0: i32) -> (i32, i32) {
    %c0_i32 = arith.constant 0 : i32
    %c0_i32_0 = arith.constant 0 : i32
    %c0_i32_1 = arith.constant 0 : i32
    return %c0_i32, %c0_i32_0 : i32, i32
  }
  func.func @transform_4(%arg0: i32) -> (i32, i32) {
    %c0_i32 = arith.constant 0 : i32
    %c0_i32_0 = arith.constant 0 : i32
    %c0_i32_1 = arith.constant 0 : i32
    return %c0_i32, %c0_i32_0 : i32, i32
  }
  func.func @transform_5(%arg0: i32) -> (i32, i32) {
    %c0_i32 = arith.constant 0 : i32
    %c0_i32_0 = arith.constant 0 : i32
    %c0_i32_1 = arith.constant 0 : i32
    return %c0_i32, %c0_i32_0 : i32, i32
  }
  func.func @transform_6(%arg0: i32) -> (i32, i32) {
    %c0_i32 = arith.constant 0 : i32
    %c0_i32_0 = arith.constant 0 : i32
    %c0_i32_1 = arith.constant 0 : i32
    return %c0_i32, %c0_i32_0 : i32, i32
  }
  func.func @transform_7(%arg0: i32) -> (i32, i32) {
    %c0_i32 = arith.constant 0 : i32
    %c0_i32_0 = arith.constant 0 : i32
    return %arg0, %c0_i32 : i32, i32
  }
  func.func @transform_8(%arg0: i32) -> (i32, i32) {
    %c0_i32 = arith.constant 0 : i32
    %c0_i32_0 = arith.constant 0 : i32
    return %arg0, %c0_i32 : i32, i32
  }
}

</mosaic_0001>

<llo_original>
// kernel: tpu_custom_call.1
$region0: #{tpu_custom_call.1}
  #allocation0 [shape = 'u32[]', space=smem, size = 0x4, offset = 0x4, fixed_abs, tag = 'smem constant byte address 0x4 - core index']
  #allocation1 [shape = 'u32[144,128]{1,0:T(1,128)}', space=vmem, size = 0x12000, scoped, tag = 'internal scratch']
  %s0 = inlined_call_operand.hbm [shape: f32[8,192], index: 0, kind: input, shape index: {}]
  %s1 = inlined_call_operand.hbm [shape: f32[8,128], index: 1, kind: input, shape index: {}]
  %s2 = inlined_call_operand.hbm [shape: f32[192,512], index: 2, kind: input, shape index: {}]
  %s3 = inlined_call_operand.vmem [shape: f32[1,512], index: 3, kind: input, shape index: {}]
  %s4 = inlined_call_operand.vmem [shape: f32[1,512], index: 4, kind: input, shape index: {}]
  %s5 = inlined_call_operand.vmem [shape: f32[1,128], index: 5, kind: input, shape index: {}]
  %s6 = inlined_call_operand.vmem [shape: f32[1,128], index: 6, kind: input, shape index: {}]
  %s7 = inlined_call_operand.hbm [shape: f32[8,128], index: 7, kind: output, shape index: {0}]
  %s8 = inlined_call_operand.hbm [shape: f32[8,128], index: 8, kind: output, shape index: {1}]
  %9 = xla_tuple %s7, %s8
  %s10 = sld [smem:[#allocation0]]
  $region58: #{tpu_custom_call.1} parent=0
    _
  %s12 = ssub.s32 1, %s10
  %s13 = scalar_select 0, %s12, %s10
  $region1: #{tpu_custom_call.1} parent=0
    #allocation2 [shape = 'u8[8192]{0}', space=vmem, size = 0x2000, scoped, tag = 'input window, operand 0, single buffered']
    #allocation3 [shape = 's32[1]{0}', space=sflag, size = 0x4, scoped, tag = 'scoped memory for tpu_custom_call.1']
    #allocation4 [shape = 's32[1]{0}', space=sflag, size = 0x4, scoped, tag = 'scoped memory for tpu_custom_call.1']
    #allocation5 [shape = 'u8[4096]{0}', space=vmem, size = 0x1000, scoped, tag = 'input window, operand 1, single buffered']
    #allocation6 [shape = 's32[1]{0}', space=sflag, size = 0x4, scoped, tag = 'scoped memory for tpu_custom_call.1']
    #allocation7 [shape = 'u8[393216]{0}', space=vmem, size = 0x60000, scoped, tag = 'input window, operand 2, single buffered']
    #allocation8 [shape = 'u8[4096]{0}', space=vmem, size = 0x1000, scoped, tag = 'output window, operand 0, single buffered']
    #allocation9 [shape = 'u8[4096]{0}', space=vmem, size = 0x1000, scoped, tag = 'output window, operand 1, single buffered']
    #allocation10 [shape = 's32[1]{0}', space=sflag, size = 0x4, scoped, tag = 'scoped memory for tpu_custom_call.1']
    %14 = vsyncpa [#allocation3], 0
    %15 = vsyncpa [#allocation6], 0
    %16 = vsyncpa [#allocation4], 0
    %17 = vsyncpa [#allocation10], 0
    // Predicated region
    $region2: #{tpu_custom_call.1} parent=1 // pred_check
      _
    $region3: #{tpu_custom_call.1} parent=1 // pred_check_branch
      %19 = sbr.rel (0) target = $region5
    $region4: #{tpu_custom_call.1} parent=1 // pred_region
      %s21 = ssub.s32 256, 256
      %22 = vsyncadd [#allocation3], %s21
      %s24 = sshll.u32 [#allocation2], 4
      %s25 = int_to_ptr.vmem [resolvable:$true] %s24
      %27 = dma.hbm_to_vmem [thread:$0]  %s0, 256, %s25, [#allocation3]
    $region5: #{tpu_custom_call.1} parent=1 // pred_fallthru
      _
    // Predicated region
    $region6: #{tpu_custom_call.1} parent=1 // pred_check
      _
    $region7: #{tpu_custom_call.1} parent=1 // pred_check_branch
      %29 = sbr.rel (0) target = $region9
    $region8: #{tpu_custom_call.1} parent=1 // pred_region
      %s31 = ssub.s32 128, 128
      %32 = vsyncadd [#allocation6], %s31
      %s34 = sshll.u32 [#allocation5], 4
      %s35 = int_to_ptr.vmem [resolvable:$true] %s34
      %37 = dma.hbm_to_vmem [thread:$0]  %s1, 128, %s35, [#allocation6]
    $region9: #{tpu_custom_call.1} parent=1 // pred_fallthru
      _
    // Predicated region
    $region10: #{tpu_custom_call.1} parent=1 // pred_check
      _
    $region11: #{tpu_custom_call.1} parent=1 // pred_check_branch
      %39 = sbr.rel (0) target = $region13
    $region12: #{tpu_custom_call.1} parent=1 // pred_region
      %s41 = ssub.s32 12288, 12288
      %42 = vsyncadd [#allocation6], %s41
      %s43 = sshll.u32 [#allocation7], 4
      %s44 = int_to_ptr.vmem [resolvable:$true] %s43
      %49 = dma.hbm_to_vmem [thread:$0]  %s2, 12288, %s44, [#allocation6], 512, 512, 32
    $region13: #{tpu_custom_call.1} parent=1 // pred_fallthru
      _
    // Predicated region
    $region14: #{tpu_custom_call.1} parent=1 // pred_check
      _
    $region15: #{tpu_custom_call.1} parent=1 // pred_check_branch
      %51 = sbr.rel (0) target = $region17
    $region16: #{tpu_custom_call.1} parent=1 // pred_region
      _
    $region17: #{tpu_custom_call.1} parent=1 // pred_fallthru
      _
    // Predicated region
    $region18: #{tpu_custom_call.1} parent=1 // pred_check
      _
    $region19: #{tpu_custom_call.1} parent=1 // pred_check_branch
      %53 = sbr.rel (0) target = $region21
    $region20: #{tpu_custom_call.1} parent=1 // pred_region
      _
    $region21: #{tpu_custom_call.1} parent=1 // pred_fallthru
      _
    // Predicated region
    $region22: #{tpu_custom_call.1} parent=1 // pred_check
      _
    $region23: #{tpu_custom_call.1} parent=1 // pred_check_branch
      %55 = sbr.rel (0) target = $region25
    $region24: #{tpu_custom_call.1} parent=1 // pred_region
      _
    $region25: #{tpu_custom_call.1} parent=1 // pred_fallthru
      _
    // Predicated region
    $region26: #{tpu_custom_call.1} parent=1 // pred_check
      _
    $region27: #{tpu_custom_call.1} parent=1 // pred_check_branch
      %57 = sbr.rel (0) target = $region29
    $region28: #{tpu_custom_call.1} parent=1 // pred_region
      _
    $region29: #{tpu_custom_call.1} parent=1 // pred_fallthru
      _
    // Predicated region
    $region30: #{tpu_custom_call.1} parent=1 // pred_check
      _
    $region31: #{tpu_custom_call.1} parent=1 // pred_check_branch
      %59 = sbr.rel (0) target = $region33
    $region32: #{tpu_custom_call.1} parent=1 // pred_region
      %60 = dma.done [#allocation3], 256
    $region33: #{tpu_custom_call.1} parent=1 // pred_fallthru
      _
    // Predicated region
    $region34: #{tpu_custom_call.1} parent=1 // pred_check
      _
    $region35: #{tpu_custom_call.1} parent=1 // pred_check_branch
      %62 = sbr.rel (0) target = $region37
    $region36: #{tpu_custom_call.1} parent=1 // pred_region
      %63 = dma.done [#allocation6], 128
    $region37: #{tpu_custom_call.1} parent=1 // pred_fallthru
      _
    // Predicated region
    $region38: #{tpu_custom_call.1} parent=1 // pred_check
      _
    $region39: #{tpu_custom_call.1} parent=1 // pred_check_branch
      %65 = sbr.rel (0) target = $region41
    $region40: #{tpu_custom_call.1} parent=1 // pred_region
      %66 = dma.done [#allocation6], 12288
    $region41: #{tpu_custom_call.1} parent=1 // pred_fallthru
      _
    %v67 = vld [vmem:[#allocation2] sm:$0xff]
    %v68 = vld [vmem:[#allocation2 + $0x8] sm:$0xff]
    %v69 = vld [vmem:[#allocation7] sm:$0xff]
    %v70 = vld [vmem:[#allocation7 + $0x8] sm:$0xff]
    %v71 = vld [vmem:[#allocation7 + $0x10] sm:$0xff]
    %v72 = vld [vmem:[#allocation7 + $0x18] sm:$0xff]
    %v73 = vld [vmem:[#allocation7 + $0x20] sm:$0xff]
    %v74 = vld [vmem:[#allocation7 + $0x28] sm:$0xff]
    %v75 = vld [vmem:[#allocation7 + $0x30] sm:$0xff]
    %v76 = vld [vmem:[#allocation7 + $0x38] sm:$0xff]
    %v77 = vld [vmem:[#allocation7 + $0x40] sm:$0xff]
    %v78 = vld [vmem:[#allocation7 + $0x48] sm:$0xff]
    %v79 = vld [vmem:[#allocation7 + $0x50] sm:$0xff]
    %v80 = vld [vmem:[#allocation7 + $0x58] sm:$0xff]
    %v81 = vld [vmem:[#allocation7 + $0x60] sm:$0xff]
    %v82 = vld [vmem:[#allocation7 + $0x68] sm:$0xff]
    %v83 = vld [vmem:[#allocation7 + $0x70] sm:$0xff]
    %v84 = vld [vmem:[#allocation7 + $0x78] sm:$0xff]
    %v85 = vld [vmem:[#allocation7 + $0x80] sm:$0xff]
    %v86 = vld [vmem:[#allocation7 + $0x88] sm:$0xff]
    %v87 = vld [vmem:[#allocation7 + $0x90] sm:$0xff]
    %v88 = vld [vmem:[#allocation7 + $0x98] sm:$0xff]
    %v89 = vld [vmem:[#allocation7 + $0xa0] sm:$0xff]
    %v90 = vld [vmem:[#allocation7 + $0xa8] sm:$0xff]
    %v91 = vld [vmem:[#allocation7 + $0xb0] sm:$0xff]
    %v92 = vld [vmem:[#allocation7 + $0xb8] sm:$0xff]
    %v93 = vld [vmem:[#allocation7 + $0xc0] sm:$0xff]
    %v94 = vld [vmem:[#allocation7 + $0xc8] sm:$0xff]
    %v95 = vld [vmem:[#allocation7 + $0xd0] sm:$0xff]
    %v96 = vld [vmem:[#allocation7 + $0xd8] sm:$0xff]
    %v97 = vld [vmem:[#allocation7 + $0xe0] sm:$0xff]
    %v98 = vld [vmem:[#allocation7 + $0xe8] sm:$0xff]
    %v99 = vld [vmem:[#allocation7 + $0xf0] sm:$0xff]
    %v100 = vld [vmem:[#allocation7 + $0xf8] sm:$0xff]
    %v101 = vld [vmem:[#allocation7 + $0x100] sm:$0xff]
    %v102 = vld [vmem:[#allocation7 + $0x108] sm:$0xff]
    %v103 = vld [vmem:[#allocation7 + $0x110] sm:$0xff]
    %v104 = vld [vmem:[#allocation7 + $0x118] sm:$0xff]
    %v105 = vld [vmem:[#allocation7 + $0x120] sm:$0xff]
    %v106 = vld [vmem:[#allocation7 + $0x128] sm:$0xff]
    %v107 = vld [vmem:[#allocation7 + $0x130] sm:$0xff]
    %v108 = vld [vmem:[#allocation7 + $0x138] sm:$0xff]
    %v109 = vld [vmem:[#allocation7 + $0x140] sm:$0xff]
    %v110 = vld [vmem:[#allocation7 + $0x148] sm:$0xff]
    %v111 = vld [vmem:[#allocation7 + $0x150] sm:$0xff]
    %v112 = vld [vmem:[#allocation7 + $0x158] sm:$0xff]
    %v113 = vld [vmem:[#allocation7 + $0x160] sm:$0xff]
    %v114 = vld [vmem:[#allocation7 + $0x168] sm:$0xff]
    %v115 = vld [vmem:[#allocation7 + $0x170] sm:$0xff]
    %v116 = vld [vmem:[#allocation7 + $0x178] sm:$0xff]
    %v117 = vld [vmem:[#allocation7 + $0x180] sm:$0xff]
    %v118 = vld [vmem:[#allocation7 + $0x188] sm:$0xff]
    %v119 = vld [vmem:[#allocation7 + $0x190] sm:$0xff]
    %v120 = vld [vmem:[#allocation7 + $0x198] sm:$0xff]
    %v121 = vld [vmem:[#allocation7 + $0x1a0] sm:$0xff]
    %v122 = vld [vmem:[#allocation7 + $0x1a8] sm:$0xff]
    %v123 = vld [vmem:[#allocation7 + $0x1b0] sm:$0xff]
    %v124 = vld [vmem:[#allocation7 + $0x1b8] sm:$0xff]
    %v125 = vld [vmem:[#allocation7 + $0x1c0] sm:$0xff]
    %v126 = vld [vmem:[#allocation7 + $0x1c8] sm:$0xff]
    %v127 = vld [vmem:[#allocation7 + $0x1d0] sm:$0xff]
    %v128 = vld [vmem:[#allocation7 + $0x1d8] sm:$0xff]
    %v129 = vld [vmem:[#allocation7 + $0x1e0] sm:$0xff]
    %v130 = vld [vmem:[#allocation7 + $0x1e8] sm:$0xff]
    %v131 = vld [vmem:[#allocation7 + $0x1f0] sm:$0xff]
    %v132 = vld [vmem:[#allocation7 + $0x1f8] sm:$0xff]
    %v133 = vld [vmem:[#allocation7 + $0x200] sm:$0xff]
    %v134 = vld [vmem:[#allocation7 + $0x208] sm:$0xff]
    %v135 = vld [vmem:[#allocation7 + $0x210] sm:$0xff]
    %v136 = vld [vmem:[#allocation7 + $0x218] sm:$0xff]
    %v137 = vld [vmem:[#allocation7 + $0x220] sm:$0xff]
    %v138 = vld [vmem:[#allocation7 + $0x228] sm:$0xff]
    %v139 = vld [vmem:[#allocation7 + $0x230] sm:$0xff]
    %v140 = vld [vmem:[#allocation7 + $0x238] sm:$0xff]
    %v141 = vld [vmem:[#allocation7 + $0x240] sm:$0xff]
    %v142 = vld [vmem:[#allocation7 + $0x248] sm:$0xff]
    %v143 = vld [vmem:[#allocation7 + $0x250] sm:$0xff]
    %v144 = vld [vmem:[#allocation7 + $0x258] sm:$0xff]
    %v145 = vld [vmem:[#allocation7 + $0x260] sm:$0xff]
    %v146 = vld [vmem:[#allocation7 + $0x268] sm:$0xff]
    %v147 = vld [vmem:[#allocation7 + $0x270] sm:$0xff]
    %v148 = vld [vmem:[#allocation7 + $0x278] sm:$0xff]
    %v149 = vld [vmem:[#allocation7 + $0x280] sm:$0xff]
    %v150 = vld [vmem:[#allocation7 + $0x288] sm:$0xff]
    %v151 = vld [vmem:[#allocation7 + $0x290] sm:$0xff]
    %v152 = vld [vmem:[#allocation7 + $0x298] sm:$0xff]
    %v153 = vld [vmem:[#allocation7 + $0x2a0] sm:$0xff]
    %v154 = vld [vmem:[#allocation7 + $0x2a8] sm:$0xff]
    %v155 = vld [vmem:[#allocation7 + $0x2b0] sm:$0xff]
    %v156 = vld [vmem:[#allocation7 + $0x2b8] sm:$0xff]
    %v157 = vld [vmem:[#allocation7 + $0x2c0] sm:$0xff]
    %v158 = vld [vmem:[#allocation7 + $0x2c8] sm:$0xff]
    %v159 = vld [vmem:[#allocation7 + $0x2d0] sm:$0xff]
    %v160 = vld [vmem:[#allocation7 + $0x2d8] sm:$0xff]
    %v161 = vld [vmem:[#allocation7 + $0x2e0] sm:$0xff]
    %v162 = vld [vmem:[#allocation7 + $0x2e8] sm:$0xff]
    %v163 = vld [vmem:[#allocation7 + $0x2f0] sm:$0xff]
    %v164 = vld [vmem:[#allocation7 + $0x2f8] sm:$0xff]
    %vm165 = vcmask 523264
    %v167 = vsel %vm165, %v68, 0
    %v169 = vand.u32 %v70, 4294901760
    %170 = vmatprep.subr.mxu0 %v169
    %v171 = vand.u32 %v69, 4294901760
    %172 = vmatpush1.msra.mxu0 %v171
    %v173 = vand.u32 %v74, 4294901760
    %174 = vmatprep.subr.mxu0 %v173
    %v175 = vand.u32 %v73, 4294901760
    %176 = vmatpush1.msra.mxu0 %v175
    %v177 = vand.u32 %v78, 4294901760
    %178 = vmatprep.subr.mxu0 %v177
    %v179 = vand.u32 %v77, 4294901760
    %180 = vmatpush1.msra.mxu0 %v179
    %v181 = vand.u32 %v82, 4294901760
    %182 = vmatprep.subr.mxu0 %v181
    %v183 = vand.u32 %v81, 4294901760
    %184 = vmatpush1.msra.mxu0 %v183
    %v185 = vand.u32 %v86, 4294901760
    %186 = vmatprep.subr.mxu0 %v185
    %v187 = vand.u32 %v85, 4294901760
    %188 = vmatpush1.msra.mxu0 %v187
    %v189 = vand.u32 %v90, 4294901760
    %190 = vmatprep.subr.mxu0 %v189
    %v191 = vand.u32 %v89, 4294901760
    %192 = vmatpush1.msra.mxu0 %v191
    %v193 = vand.u32 %v94, 4294901760
    %194 = vmatprep.subr.mxu0 %v193
    %v195 = vand.u32 %v93, 4294901760
    %196 = vmatpush1.msra.mxu0 %v195
    %v197 = vand.u32 %v98, 4294901760
    %198 = vmatprep.subr.mxu0 %v197
    %v199 = vand.u32 %v97, 4294901760
    %200 = vmatpush1.msra.mxu0 %v199
    %v201 = vand.u32 %v102, 4294901760
    %202 = vmatprep.subr.mxu0 %v201
    %v203 = vand.u32 %v101, 4294901760
    %204 = vmatpush1.msra.mxu0 %v203
    %v205 = vand.u32 %v106, 4294901760
    %206 = vmatprep.subr.mxu0 %v205
    %v207 = vand.u32 %v105, 4294901760
    %208 = vmatpush1.msra.mxu0 %v207
    %v209 = vand.u32 %v110, 4294901760
    %210 = vmatprep.subr.mxu0 %v209
    %v211 = vand.u32 %v109, 4294901760
    %212 = vmatpush1.msra.mxu0 %v211
    %v213 = vand.u32 %v114, 4294901760
    %214 = vmatprep.subr.mxu0 %v213
    %v215 = vand.u32 %v113, 4294901760
    %216 = vmatpush1.msra.mxu0 %v215
    %v217 = vand.u32 %v118, 4294901760
    %218 = vmatprep.subr.mxu0 %v217
    %v219 = vand.u32 %v117, 4294901760
    %220 = vmatpush1.msra.mxu0 %v219
    %v221 = vand.u32 %v122, 4294901760
    %222 = vmatprep.subr.mxu0 %v221
    %v223 = vand.u32 %v121, 4294901760
    %224 = vmatpush1.msra.mxu0 %v223
    %v225 = vand.u32 %v126, 4294901760
    %226 = vmatprep.subr.mxu0 %v225
    %v227 = vand.u32 %v125, 4294901760
    %228 = vmatpush1.msra.mxu0 %v227
    %v229 = vand.u32 %v130, 4294901760
    %230 = vmatprep.subr.mxu0 %v229
    %v231 = vand.u32 %v129, 4294901760
    %232 = vmatpush1.msra.mxu0 %v231
    %v233 = vand.u32 %v134, 4294901760
    %234 = vmatprep.subr.mxu0 %v233
    %v235 = vand.u32 %v133, 4294901760
    %236 = vmatpush1.msra.mxu0 %v235
    %v237 = vand.u32 %v138, 4294901760
    %238 = vmatprep.subr.mxu0 %v237
    %v239 = vand.u32 %v137, 4294901760
    %240 = vmatpush1.msra.mxu0 %v239
    %v241 = vand.u32 %v142, 4294901760
    %242 = vmatprep.subr.mxu0 %v241
    %v243 = vand.u32 %v141, 4294901760
    %244 = vmatpush1.msra.mxu0 %v243
    %v245 = vand.u32 %v146, 4294901760
    %246 = vmatprep.subr.mxu0 %v245
    %v247 = vand.u32 %v145, 4294901760
    %248 = vmatpush1.msra.mxu0 %v247
    %v249 = vand.u32 %v150, 4294901760
    %250 = vmatprep.subr.mxu0 %v249
    %v251 = vand.u32 %v149, 4294901760
    %252 = vmatpush1.msra.mxu0 %v251
    %v253 = vand.u32 %v154, 4294901760
    %254 = vmatprep.subr.mxu0 %v253
    %v255 = vand.u32 %v153, 4294901760
    %256 = vmatpush1.msra.mxu0 %v255
    %v257 = vand.u32 %v158, 4294901760
    %258 = vmatprep.subr.mxu0 %v257
    %v259 = vand.u32 %v157, 4294901760
    %260 = vmatpush1.msra.mxu0 %v259
    %v261 = vand.u32 %v162, 4294901760
    %262 = vmatprep.subr.mxu0 %v261
    %v263 = vand.u32 %v161, 4294901760
    %264 = vmatpush1.msra.mxu0 %v263
    %265 = vmatprep.subr.mxu0 0.0
    %266 = vmatpush1.msra.mxu0 0.0
    %267 = vmatprep.subr.mxu0 0.0
    %268 = vmatpush1.msra.mxu0 0.0
    %269 = vmatprep.subr.mxu0 0.0
    %270 = vmatpush1.msra.mxu0 0.0
    %271 = vmatprep.subr.mxu0 0.0
    %272 = vmatpush1.msra.mxu0 0.0
    %273 = vmatprep.subr.mxu0 0.0
    %274 = vmatpush1.msra.mxu0 0.0
    %275 = vmatprep.subr.mxu0 0.0
    %276 = vmatpush1.msra.mxu0 0.0
    %277 = vmatprep.subr.mxu0 0.0
    %278 = vmatpush1.msra.mxu0 0.0
    %279 = vmatprep.subr.mxu0 0.0
    %280 = vmatpush1.msra.mxu0 0.0
    %v281 = vand.u32 %v167, 4294901760
    %v282 = vsub.f32 %v167, %v281
    %v283 = vand.u32 %v282, 4294901760
    %v284 = vsub.f32 %v282, %v283
    %v285 = vand.u32 %v284, 4294901760
    %286 = vmatprep.mubr.f32.mxu0 %v285
    %v287 = vand.u32 %v67, 4294901760
    %v288 = vsub.f32 %v67, %v287
    %v289 = vand.u32 %v288, 4294901760
    %v290 = vsub.f32 %v288, %v289
    %v291 = vand.u32 %v290, 4294901760
    %292 = vmatmul.mubr.f32.gmra.mrb[0].mxu0 %v291
    %v293 = vpop.f32.mrb[0].mxu0
    %v294 = vadd.f32 0.0, %v293
    %v295 = vpop.f32.mrb[0].mxu0
    %v296 = vadd.f32 0.0, %v295
    %297 = vdwg.mxu0
    %v298 = vand.u32 %v70, 4294901760
    %v299 = vsub.f32 %v70, %v298
    %v300 = vand.u32 %v299, 4294901760
    %v301 = vsub.f32 %v299, %v300
    %v302 = vand.u32 %v301, 4294901760
    %303 = vmatprep.subr.mxu0 %v302
    %v304 = vand.u32 %v69, 4294901760
    %v305 = vsub.f32 %v69, %v304
    %v306 = vand.u32 %v305, 4294901760
    %v307 = vsub.f32 %v305, %v306
    %v308 = vand.u32 %v307, 4294901760
    %309 = vmatpush1.msra.mxu0 %v308
    %v310 = vand.u32 %v74, 4294901760
    %v311 = vsub.f32 %v74, %v310
    %v312 = vand.u32 %v311, 4294901760
    %v313 = vsub.f32 %v311, %v312
    %v314 = vand.u32 %v313, 4294901760
    %315 = vmatprep.subr.mxu0 %v314
    %v316 = vand.u32 %v73, 4294901760
    %v317 = vsub.f32 %v73, %v316
    %v318 = vand.u32 %v317, 4294901760
    %v319 = vsub.f32 %v317, %v318
    %v320 = vand.u32 %v319, 4294901760
    %321 = vmatpush1.msra.mxu0 %v320
    %v322 = vand.u32 %v78, 4294901760
    %v323 = vsub.f32 %v78, %v322
    %v324 = vand.u32 %v323, 4294901760
    %v325 = vsub.f32 %v323, %v324
    %v326 = vand.u32 %v325, 4294901760
    %327 = vmatprep.subr.mxu0 %v326
    %v328 = vand.u32 %v77, 4294901760
    %v329 = vsub.f32 %v77, %v328
    %v330 = vand.u32 %v329, 4294901760
    %v331 = vsub.f32 %v329, %v330
    %v332 = vand.u32 %v331, 4294901760
    %333 = vmatpush1.msra.mxu0 %v332
    %v334 = vand.u32 %v82, 4294901760
    %v335 = vsub.f32 %v82, %v334
    %v336 = vand.u32 %v335, 4294901760
    %v337 = vsub.f32 %v335, %v336
    %v338 = vand.u32 %v337, 4294901760
    %339 = vmatprep.subr.mxu0 %v338
    %v340 = vand.u32 %v81, 4294901760
    %v341 = vsub.f32 %v81, %v340
    %v342 = vand.u32 %v341, 4294901760
    %v343 = vsub.f32 %v341, %v342
    %v344 = vand.u32 %v343, 4294901760
    %345 = vmatpush1.msra.mxu0 %v344
    %v346 = vand.u32 %v86, 4294901760
    %v347 = vsub.f32 %v86, %v346
    %v348 = vand.u32 %v347, 4294901760
    %v349 = vsub.f32 %v347, %v348
    %v350 = vand.u32 %v349, 4294901760
    %351 = vmatprep.subr.mxu0 %v350
    %v352 = vand.u32 %v85, 4294901760
    %v353 = vsub.f32 %v85, %v352
    %v354 = vand.u32 %v353, 4294901760
    %v355 = vsub.f32 %v353, %v354
    %v356 = vand.u32 %v355, 4294901760
    %357 = vmatpush1.msra.mxu0 %v356
    %v358 = vand.u32 %v90, 4294901760
    %v359 = vsub.f32 %v90, %v358
    %v360 = vand.u32 %v359, 4294901760
    %v361 = vsub.f32 %v359, %v360
    %v362 = vand.u32 %v361, 4294901760
    %363 = vmatprep.subr.mxu0 %v362
    %v364 = vand.u32 %v89, 4294901760
    %v365 = vsub.f32 %v89, %v364
    %v366 = vand.u32 %v365, 4294901760
    %v367 = vsub.f32 %v365, %v366
    %v368 = vand.u32 %v367, 4294901760
    %369 = vmatpush1.msra.mxu0 %v368
    %v370 = vand.u32 %v94, 4294901760
    %v371 = vsub.f32 %v94, %v370
    %v372 = vand.u32 %v371, 4294901760
    %v373 = vsub.f32 %v371, %v372
    %v374 = vand.u32 %v373, 4294901760
    %375 = vmatprep.subr.mxu0 %v374
    %v376 = vand.u32 %v93, 4294901760
    %v377 = vsub.f32 %v93, %v376
    %v378 = vand.u32 %v377, 4294901760
    %v379 = vsub.f32 %v377, %v378
    %v380 = vand.u32 %v379, 4294901760
    %381 = vmatpush1.msra.mxu0 %v380
    %v382 = vand.u32 %v98, 4294901760
    %v383 = vsub.f32 %v98, %v382
    %v384 = vand.u32 %v383, 4294901760
    %v385 = vsub.f32 %v383, %v384
    %v386 = vand.u32 %v385, 4294901760
    %387 = vmatprep.subr.mxu0 %v386
    %v388 = vand.u32 %v97, 4294901760
    %v389 = vsub.f32 %v97, %v388
    %v390 = vand.u32 %v389, 4294901760
    %v391 = vsub.f32 %v389, %v390
    %v392 = vand.u32 %v391, 4294901760
    %393 = vmatpush1.msra.mxu0 %v392
    %v394 = vand.u32 %v102, 4294901760
    %v395 = vsub.f32 %v102, %v394
    %v396 = vand.u32 %v395, 4294901760
    %v397 = vsub.f32 %v395, %v396
    %v398 = vand.u32 %v397, 4294901760
    %399 = vmatprep.subr.mxu0 %v398
    %v400 = vand.u32 %v101, 4294901760
    %v401 = vsub.f32 %v101, %v400
    %v402 = vand.u32 %v401, 4294901760
    %v403 = vsub.f32 %v401, %v402
    %v404 = vand.u32 %v403, 4294901760
    %405 = vmatpush1.msra.mxu0 %v404
    %v406 = vand.u32 %v106, 4294901760
    %v407 = vsub.f32 %v106, %v406
    %v408 = vand.u32 %v407, 4294901760
    %v409 = vsub.f32 %v407, %v408
    %v410 = vand.u32 %v409, 4294901760
    %411 = vmatprep.subr.mxu0 %v410
    %v412 = vand.u32 %v105, 4294901760
    %v413 = vsub.f32 %v105, %v412
    %v414 = vand.u32 %v413, 4294901760
    %v415 = vsub.f32 %v413, %v414
    %v416 = vand.u32 %v415, 4294901760
    %417 = vmatpush1.msra.mxu0 %v416
    %v418 = vand.u32 %v110, 4294901760
    %v419 = vsub.f32 %v110, %v418
    %v420 = vand.u32 %v419, 4294901760
    %v421 = vsub.f32 %v419, %v420
    %v422 = vand.u32 %v421, 4294901760
    %423 = vmatprep.subr.mxu0 %v422
    %v424 = vand.u32 %v109, 4294901760
    %v425 = vsub.f32 %v109, %v424
    %v426 = vand.u32 %v425, 4294901760
    %v427 = vsub.f32 %v425, %v426
    %v428 = vand.u32 %v427, 4294901760
    %429 = vmatpush1.msra.mxu0 %v428
    %v430 = vand.u32 %v114, 4294901760
    %v431 = vsub.f32 %v114, %v430
    %v432 = vand.u32 %v431, 4294901760
    %v433 = vsub.f32 %v431, %v432
    %v434 = vand.u32 %v433, 4294901760
    %435 = vmatprep.subr.mxu0 %v434
    %v436 = vand.u32 %v113, 4294901760
    %v437 = vsub.f32 %v113, %v436
    %v438 = vand.u32 %v437, 4294901760
    %v439 = vsub.f32 %v437, %v438
    %v440 = vand.u32 %v439, 4294901760
    %441 = vmatpush1.msra.mxu0 %v440
    %v442 = vand.u32 %v118, 4294901760
    %v443 = vsub.f32 %v118, %v442
    %v444 = vand.u32 %v443, 4294901760
    %v445 = vsub.f32 %v443, %v444
    %v446 = vand.u32 %v445, 4294901760
    %447 = vmatprep.subr.mxu0 %v446
    %v448 = vand.u32 %v117, 4294901760
    %v449 = vsub.f32 %v117, %v448
    %v450 = vand.u32 %v449, 4294901760
    %v451 = vsub.f32 %v449, %v450
    %v452 = vand.u32 %v451, 4294901760
    %453 = vmatpush1.msra.mxu0 %v452
    %v454 = vand.u32 %v122, 4294901760
    %v455 = vsub.f32 %v122, %v454
    %v456 = vand.u32 %v455, 4294901760
    %v457 = vsub.f32 %v455, %v456
    %v458 = vand.u32 %v457, 4294901760
    %459 = vmatprep.subr.mxu0 %v458
    %v460 = vand.u32 %v121, 4294901760
    %v461 = vsub.f32 %v121, %v460
    %v462 = vand.u32 %v461, 4294901760
    %v463 = vsub.f32 %v461, %v462
    %v464 = vand.u32 %v463, 4294901760
    %465 = vmatpush1.msra.mxu0 %v464
    %v466 = vand.u32 %v126, 4294901760
    %v467 = vsub.f32 %v126, %v466
    %v468 = vand.u32 %v467, 4294901760
    %v469 = vsub.f32 %v467, %v468
    %v470 = vand.u32 %v469, 4294901760
    %471 = vmatprep.subr.mxu0 %v470
    %v472 = vand.u32 %v125, 4294901760
    %v473 = vsub.f32 %v125, %v472
    %v474 = vand.u32 %v473, 4294901760
    %v475 = vsub.f32 %v473, %v474
    %v476 = vand.u32 %v475, 4294901760
    %477 = vmatpush1.msra.mxu0 %v476
    %v478 = vand.u32 %v130, 4294901760
    %v479 = vsub.f32 %v130, %v478
    %v480 = vand.u32 %v479, 4294901760
    %v481 = vsub.f32 %v479, %v480
    %v482 = vand.u32 %v481, 4294901760
    %483 = vmatprep.subr.mxu0 %v482
    %v484 = vand.u32 %v129, 4294901760
    %v485 = vsub.f32 %v129, %v484
    %v486 = vand.u32 %v485, 4294901760
    %v487 = vsub.f32 %v485, %v486
    %v488 = vand.u32 %v487, 4294901760
    %489 = vmatpush1.msra.mxu0 %v488
    %v490 = vand.u32 %v134, 4294901760
    %v491 = vsub.f32 %v134, %v490
    %v492 = vand.u32 %v491, 4294901760
    %v493 = vsub.f32 %v491, %v492
    %v494 = vand.u32 %v493, 4294901760
    %495 = vmatprep.subr.mxu0 %v494
    %v496 = vand.u32 %v133, 4294901760
    %v497 = vsub.f32 %v133, %v496
    %v498 = vand.u32 %v497, 4294901760
    %v499 = vsub.f32 %v497, %v498
    %v500 = vand.u32 %v499, 4294901760
    %501 = vmatpush1.msra.mxu0 %v500
    %v502 = vand.u32 %v138, 4294901760
    %v503 = vsub.f32 %v138, %v502
    %v504 = vand.u32 %v503, 4294901760
    %v505 = vsub.f32 %v503, %v504
    %v506 = vand.u32 %v505, 4294901760
    %507 = vmatprep.subr.mxu0 %v506
    %v508 = vand.u32 %v137, 4294901760
    %v509 = vsub.f32 %v137, %v508
    %v510 = vand.u32 %v509, 4294901760
    %v511 = vsub.f32 %v509, %v510
    %v512 = vand.u32 %v511, 4294901760
    %513 = vmatpush1.msra.mxu0 %v512
    %v514 = vand.u32 %v142, 4294901760
    %v515 = vsub.f32 %v142, %v514
    %v516 = vand.u32 %v515, 4294901760
    %v517 = vsub.f32 %v515, %v516
    %v518 = vand.u32 %v517, 4294901760
    %519 = vmatprep.subr.mxu0 %v518
    %v520 = vand.u32 %v141, 4294901760
    %v521 = vsub.f32 %v141, %v520
    %v522 = vand.u32 %v521, 4294901760
    %v523 = vsub.f32 %v521, %v522
    %v524 = vand.u32 %v523, 4294901760
    %525 = vmatpush1.msra.mxu0 %v524
    %v526 = vand.u32 %v146, 4294901760
    %v527 = vsub.f32 %v146, %v526
    %v528 = vand.u32 %v527, 4294901760
    %v529 = vsub.f32 %v527, %v528
    %v530 = vand.u32 %v529, 4294901760
    %531 = vmatprep.subr.mxu0 %v530
    %v532 = vand.u32 %v145, 4294901760
    %v533 = vsub.f32 %v145, %v532
    %v534 = vand.u32 %v533, 4294901760
    %v535 = vsub.f32 %v533, %v534
    %v536 = vand.u32 %v535, 4294901760
    %537 = vmatpush1.msra.mxu0 %v536
    %v538 = vand.u32 %v150, 4294901760
    %v539 = vsub.f32 %v150, %v538
    %v540 = vand.u32 %v539, 4294901760
    %v541 = vsub.f32 %v539, %v540
    %v542 = vand.u32 %v541, 4294901760
    %543 = vmatprep.subr.mxu0 %v542
    %v544 = vand.u32 %v149, 4294901760
    %v545 = vsub.f32 %v149, %v544
    %v546 = vand.u32 %v545, 4294901760
    %v547 = vsub.f32 %v545, %v546
    %v548 = vand.u32 %v547, 4294901760
    %549 = vmatpush1.msra.mxu0 %v548
    %v550 = vand.u32 %v154, 4294901760
    %v551 = vsub.f32 %v154, %v550
    %v552 = vand.u32 %v551, 4294901760
    %v553 = vsub.f32 %v551, %v552
    %v554 = vand.u32 %v553, 4294901760
    %555 = vmatprep.subr.mxu0 %v554
    %v556 = vand.u32 %v153, 4294901760
    %v557 = vsub.f32 %v153, %v556
    %v558 = vand.u32 %v557, 4294901760
    %v559 = vsub.f32 %v557, %v558
    %v560 = vand.u32 %v559, 4294901760
    %561 = vmatpush1.msra.mxu0 %v560
    %v562 = vand.u32 %v158, 4294901760
    %v563 = vsub.f32 %v158, %v562
    %v564 = vand.u32 %v563, 4294901760
    %v565 = vsub.f32 %v563, %v564
    %v566 = vand.u32 %v565, 4294901760
    %567 = vmatprep.subr.mxu0 %v566
    %v568 = vand.u32 %v157, 4294901760
    %v569 = vsub.f32 %v157, %v568
    %v570 = vand.u32 %v569, 4294901760
    %v571 = vsub.f32 %v569, %v570
    %v572 = vand.u32 %v571, 4294901760
    %573 = vmatpush1.msra.mxu0 %v572
    %v574 = vand.u32 %v162, 4294901760
    %v575 = vsub.f32 %v162, %v574
    %v576 = vand.u32 %v575, 4294901760
    %v577 = vsub.f32 %v575, %v576
    %v578 = vand.u32 %v577, 4294901760
    %579 = vmatprep.subr.mxu0 %v578
    %v580 = vand.u32 %v161, 4294901760
    %v581 = vsub.f32 %v161, %v580
    %v582 = vand.u32 %v581, 4294901760
    %v583 = vsub.f32 %v581, %v582
    %v584 = vand.u32 %v583, 4294901760
    %585 = vmatpush1.msra.mxu0 %v584
    %586 = vmatprep.subr.mxu0 0.0
    %587 = vmatpush1.msra.mxu0 0.0
    %588 = vmatprep.subr.mxu0 0.0
    %589 = vmatpush1.msra.mxu0 0.0
    %590 = vmatprep.subr.mxu0 0.0
    %591 = vmatpush1.msra.mxu0 0.0
    %592 = vmatprep.subr.mxu0 0.0
    %593 = vmatpush1.msra.mxu0 0.0
    %594 = vmatprep.subr.mxu0 0.0
    %595 = vmatpush1.msra.mxu0 0.0
    %596 = vmatprep.subr.mxu0 0.0
    %597 = vmatpush1.msra.mxu0 0.0
    %598 = vmatprep.subr.mxu0 0.0
    %599 = vmatpush1.msra.mxu0 0.0
    %600 = vmatprep.subr.mxu0 0.0
    %601 = vmatpush1.msra.mxu0 0.0
    %v602 = vand.u32 %v167, 4294901760
    %603 = vmatprep.mubr.f32.mxu0 %v602
    %v604 = vand.u32 %v67, 4294901760
    %605 = vmatmul.mubr.f32.gmra.mrb[0].mxu0 %v604
    %v606 = vpop.f32.mrb[0].mxu0
    %v607 = vadd.f32 %v294, %v606
    %v608 = vpop.f32.mrb[0].mxu0
    %v609 = vadd.f32 %v296, %v608
    %610 = vdwg.mxu0
    %v611 = vand.u32 %v70, 4294901760
    %v612 = vsub.f32 %v70, %v611
    %613 = vmatprep.subr.mxu0 %v612
    %v614 = vand.u32 %v69, 4294901760
    %v615 = vsub.f32 %v69, %v614
    %616 = vmatpush1.msra.mxu0 %v615
    %v617 = vand.u32 %v74, 4294901760
    %v618 = vsub.f32 %v74, %v617
    %619 = vmatprep.subr.mxu0 %v618
    %v620 = vand.u32 %v73, 4294901760
    %v621 = vsub.f32 %v73, %v620
    %622 = vmatpush1.msra.mxu0 %v621
    %v623 = vand.u32 %v78, 4294901760
    %v624 = vsub.f32 %v78, %v623
    %625 = vmatprep.subr.mxu0 %v624
    %v626 = vand.u32 %v77, 4294901760
    %v627 = vsub.f32 %v77, %v626
    %628 = vmatpush1.msra.mxu0 %v627
    %v629 = vand.u32 %v82, 4294901760
    %v630 = vsub.f32 %v82, %v629
    %631 = vmatprep.subr.mxu0 %v630
    %v632 = vand.u32 %v81, 4294901760
    %v633 = vsub.f32 %v81, %v632
    %634 = vmatpush1.msra.mxu0 %v633
    %v635 = vand.u32 %v86, 4294901760
    %v636 = vsub.f32 %v86, %v635
    %637 = vmatprep.subr.mxu0 %v636
    %v638 = vand.u32 %v85, 4294901760
    %v639 = vsub.f32 %v85, %v638
    %640 = vmatpush1.msra.mxu0 %v639
    %v641 = vand.u32 %v90, 4294901760
    %v642 = vsub.f32 %v90, %v641
    %643 = vmatprep.subr.mxu0 %v642
    %v644 = vand.u32 %v89, 4294901760
    %v645 = vsub.f32 %v89, %v644
    %646 = vmatpush1.msra.mxu0 %v645
    %v647 = vand.u32 %v94, 4294901760
    %v648 = vsub.f32 %v94, %v647
    %649 = vmatprep.subr.mxu0 %v648
    %v650 = vand.u32 %v93, 4294901760
    %v651 = vsub.f32 %v93, %v650
    %652 = vmatpush1.msra.mxu0 %v651
    %v653 = vand.u32 %v98, 4294901760
    %v654 = vsub.f32 %v98, %v653
    %655 = vmatprep.subr.mxu0 %v654
    %v656 = vand.u32 %v97, 4294901760
    %v657 = vsub.f32 %v97, %v656
    %658 = vmatpush1.msra.mxu0 %v657
    %v659 = vand.u32 %v102, 4294901760
    %v660 = vsub.f32 %v102, %v659
    %661 = vmatprep.subr.mxu0 %v660
    %v662 = vand.u32 %v101, 4294901760
    %v663 = vsub.f32 %v101, %v662
    %664 = vmatpush1.msra.mxu0 %v663
    %v665 = vand.u32 %v106, 4294901760
    %v666 = vsub.f32 %v106, %v665
    %667 = vmatprep.subr.mxu0 %v666
    %v668 = vand.u32 %v105, 4294901760
    %v669 = vsub.f32 %v105, %v668
    %670 = vmatpush1.msra.mxu0 %v669
    %v671 = vand.u32 %v110, 4294901760
    %v672 = vsub.f32 %v110, %v671
    %673 = vmatprep.subr.mxu0 %v672
    %v674 = vand.u32 %v109, 4294901760
    %v675 = vsub.f32 %v109, %v674
    %676 = vmatpush1.msra.mxu0 %v675
    %v677 = vand.u32 %v114, 4294901760
    %v678 = vsub.f32 %v114, %v677
    %679 = vmatprep.subr.mxu0 %v678
    %v680 = vand.u32 %v113, 4294901760
    %v681 = vsub.f32 %v113, %v680
    %682 = vmatpush1.msra.mxu0 %v681
    %v683 = vand.u32 %v118, 4294901760
    %v684 = vsub.f32 %v118, %v683
    %685 = vmatprep.subr.mxu0 %v684
    %v686 = vand.u32 %v117, 4294901760
    %v687 = vsub.f32 %v117, %v686
    %688 = vmatpush1.msra.mxu0 %v687
    %v689 = vand.u32 %v122, 4294901760
    %v690 = vsub.f32 %v122, %v689
    %691 = vmatprep.subr.mxu0 %v690
    %v692 = vand.u32 %v121, 4294901760
    %v693 = vsub.f32 %v121, %v692
    %694 = vmatpush1.msra.mxu0 %v693
    %v695 = vand.u32 %v126, 4294901760
    %v696 = vsub.f32 %v126, %v695
    %697 = vmatprep.subr.mxu0 %v696
    %v698 = vand.u32 %v125, 4294901760
    %v699 = vsub.f32 %v125, %v698
    %700 = vmatpush1.msra.mxu0 %v699
    %v701 = vand.u32 %v130, 4294901760
    %v702 = vsub.f32 %v130, %v701
    %703 = vmatprep.subr.mxu0 %v702
    %v704 = vand.u32 %v129, 4294901760
    %v705 = vsub.f32 %v129, %v704
    %706 = vmatpush1.msra.mxu0 %v705
    %v707 = vand.u32 %v134, 4294901760
    %v708 = vsub.f32 %v134, %v707
    %709 = vmatprep.subr.mxu0 %v708
    %v710 = vand.u32 %v133, 4294901760
    %v711 = vsub.f32 %v133, %v710
    %712 = vmatpush1.msra.mxu0 %v711
    %v713 = vand.u32 %v138, 4294901760
    %v714 = vsub.f32 %v138, %v713
    %715 = vmatprep.subr.mxu0 %v714
    %v716 = vand.u32 %v137, 4294901760
    %v717 = vsub.f32 %v137, %v716
    %718 = vmatpush1.msra.mxu0 %v717
    %v719 = vand.u32 %v142, 4294901760
    %v720 = vsub.f32 %v142, %v719
    %721 = vmatprep.subr.mxu0 %v720
    %v722 = vand.u32 %v141, 4294901760
    %v723 = vsub.f32 %v141, %v722
    %724 = vmatpush1.msra.mxu0 %v723
    %v725 = vand.u32 %v146, 4294901760
    %v726 = vsub.f32 %v146, %v725
    %727 = vmatprep.subr.mxu0 %v726
    %v728 = vand.u32 %v145, 4294901760
    %v729 = vsub.f32 %v145, %v728
    %730 = vmatpush1.msra.mxu0 %v729
    %v731 = vand.u32 %v150, 4294901760
    %v732 = vsub.f32 %v150, %v731
    %733 = vmatprep.subr.mxu0 %v732
    %v734 = vand.u32 %v149, 4294901760
    %v735 = vsub.f32 %v149, %v734
    %736 = vmatpush1.msra.mxu0 %v735
    %v737 = vand.u32 %v154, 4294901760
    %v738 = vsub.f32 %v154, %v737
    %739 = vmatprep.subr.mxu0 %v738
    %v740 = vand.u32 %v153, 4294901760
    %v741 = vsub.f32 %v153, %v740
    %742 = vmatpush1.msra.mxu0 %v741
    %v743 = vand.u32 %v158, 4294901760
    %v744 = vsub.f32 %v158, %v743
    %745 = vmatprep.subr.mxu0 %v744
    %v746 = vand.u32 %v157, 4294901760
    %v747 = vsub.f32 %v157, %v746
    %748 = vmatpush1.msra.mxu0 %v747
    %v749 = vand.u32 %v162, 4294901760
    %v750 = vsub.f32 %v162, %v749
    %751 = vmatprep.subr.mxu0 %v750
    %v752 = vand.u32 %v161, 4294901760
    %v753 = vsub.f32 %v161, %v752
    %754 = vmatpush1.msra.mxu0 %v753
    %755 = vmatprep.subr.mxu0 0.0
    %756 = vmatpush1.msra.mxu0 0.0
    %757 = vmatprep.subr.mxu0 0.0
    %758 = vmatpush1.msra.mxu0 0.0
    %759 = vmatprep.subr.mxu0 0.0
    %760 = vmatpush1.msra.mxu0 0.0
    %761 = vmatprep.subr.mxu0 0.0
    %762 = vmatpush1.msra.mxu0 0.0
    %763 = vmatprep.subr.mxu0 0.0
    %764 = vmatpush1.msra.mxu0 0.0
    %765 = vmatprep.subr.mxu0 0.0
    %766 = vmatpush1.msra.mxu0 0.0
    %767 = vmatprep.subr.mxu0 0.0
    %768 = vmatpush1.msra.mxu0 0.0
    %769 = vmatprep.subr.mxu0 0.0
    %770 = vmatpush1.msra.mxu0 0.0
    %v771 = vand.u32 %v167, 4294901760
    %v772 = vsub.f32 %v167, %v771
    %773 = vmatprep.mubr.f32.mxu0 %v772
    %v774 = vand.u32 %v67, 4294901760
    %v775 = vsub.f32 %v67, %v774
    %776 = vmatmul.mubr.f32.gmra.mrb[0].mxu0 %v775
    %v777 = vpop.f32.mrb[0].mxu0
    %v778 = vadd.f32 %v607, %v777
    %v779 = vpop.f32.mrb[0].mxu0
    %v780 = vadd.f32 %v609, %v779
    %781 = vdwg.mxu0
    %v782 = vand.u32 %v70, 4294901760
    %783 = vmatprep.subr.mxu0 %v782
    %v784 = vand.u32 %v69, 4294901760
    %785 = vmatpush1.msra.mxu0 %v784
    %v786 = vand.u32 %v74, 4294901760
    %787 = vmatprep.subr.mxu0 %v786
    %v788 = vand.u32 %v73, 4294901760
    %789 = vmatpush1.msra.mxu0 %v788
    %v790 = vand.u32 %v78, 4294901760
    %791 = vmatprep.subr.mxu0 %v790
    %v792 = vand.u32 %v77, 4294901760
    %793 = vmatpush1.msra.mxu0 %v792
    %v794 = vand.u32 %v82, 4294901760
    %795 = vmatprep.subr.mxu0 %v794
    %v796 = vand.u32 %v81, 4294901760
    %797 = vmatpush1.msra.mxu0 %v796
    %v798 = vand.u32 %v86, 4294901760
    %799 = vmatprep.subr.mxu0 %v798
    %v800 = vand.u32 %v85, 4294901760
    %801 = vmatpush1.msra.mxu0 %v800
    %v802 = vand.u32 %v90, 4294901760
    %803 = vmatprep.subr.mxu0 %v802
    %v804 = vand.u32 %v89, 4294901760
    %805 = vmatpush1.msra.mxu0 %v804
    %v806 = vand.u32 %v94, 4294901760
    %807 = vmatprep.subr.mxu0 %v806
    %v808 = vand.u32 %v93, 4294901760
    %809 = vmatpush1.msra.mxu0 %v808
    %v810 = vand.u32 %v98, 4294901760
    %811 = vmatprep.subr.mxu0 %v810
    %v812 = vand.u32 %v97, 4294901760
    %813 = vmatpush1.msra.mxu0 %v812
    %v814 = vand.u32 %v102, 4294901760
    %815 = vmatprep.subr.mxu0 %v814
    %v816 = vand.u32 %v101, 4294901760
    %817 = vmatpush1.msra.mxu0 %v816
    %v818 = vand.u32 %v106, 4294901760
    %819 = vmatprep.subr.mxu0 %v818
    %v820 = vand.u32 %v105, 4294901760
    %821 = vmatpush1.msra.mxu0 %v820
    %v822 = vand.u32 %v110, 4294901760
    %823 = vmatprep.subr.mxu0 %v822
    %v824 = vand.u32 %v109, 4294901760
    %825 = vmatpush1.msra.mxu0 %v824
    %v826 = vand.u32 %v114, 4294901760
    %827 = vmatprep.subr.mxu0 %v826
    %v828 = vand.u32 %v113, 4294901760
    %829 = vmatpush1.msra.mxu0 %v828
    %v830 = vand.u32 %v118, 4294901760
    %831 = vmatprep.subr.mxu0 %v830
    %v832 = vand.u32 %v117, 4294901760
    %833 = vmatpush1.msra.mxu0 %v832
    %v834 = vand.u32 %v122, 4294901760
    %835 = vmatprep.subr.mxu0 %v834
    %v836 = vand.u32 %v121, 4294901760
    %837 = vmatpush1.msra.mxu0 %v836
    %v838 = vand.u32 %v126, 4294901760
    %839 = vmatprep.subr.mxu0 %v838
    %v840 = vand.u32 %v125, 4294901760
    %841 = vmatpush1.msra.mxu0 %v840
    %v842 = vand.u32 %v130, 4294901760
    %843 = vmatprep.subr.mxu0 %v842
    %v844 = vand.u32 %v129, 4294901760
    %845 = vmatpush1.msra.mxu0 %v844
    %v846 = vand.u32 %v134, 4294901760
    %847 = vmatprep.subr.mxu0 %v846
    %v848 = vand.u32 %v133, 4294901760
    %849 = vmatpush1.msra.mxu0 %v848
    %v850 = vand.u32 %v138, 4294901760
    %851 = vmatprep.subr.mxu0 %v850
    %v852 = vand.u32 %v137, 4294901760
    %853 = vmatpush1.msra.mxu0 %v852
    %v854 = vand.u32 %v142, 4294901760
    %855 = vmatprep.subr.mxu0 %v854
    %v856 = vand.u32 %v141, 4294901760
    %857 = vmatpush1.msra.mxu0 %v856
    %v858 = vand.u32 %v146, 4294901760
    %859 = vmatprep.subr.mxu0 %v858
    %v860 = vand.u32 %v145, 4294901760
    %861 = vmatpush1.msra.mxu0 %v860
    %v862 = vand.u32 %v150, 4294901760
    %863 = vmatprep.subr.mxu0 %v862
    %v864 = vand.u32 %v149, 4294901760
    %865 = vmatpush1.msra.mxu0 %v864
    %v866 = vand.u32 %v154, 4294901760
    %867 = vmatprep.subr.mxu0 %v866
    %v868 = vand.u32 %v153, 4294901760
    %869 = vmatpush1.msra.mxu0 %v868
    %v870 = vand.u32 %v158, 4294901760
    %871 = vmatprep.subr.mxu0 %v870
    %v872 = vand.u32 %v157, 4294901760
    %873 = vmatpush1.msra.mxu0 %v872
    %v874 = vand.u32 %v162, 4294901760
    %875 = vmatprep.subr.mxu0 %v874
    %v876 = vand.u32 %v161, 4294901760
    %877 = vmatpush1.msra.mxu0 %v876
    %878 = vmatprep.subr.mxu0 0.0
    %879 = vmatpush1.msra.mxu0 0.0
    %880 = vmatprep.subr.mxu0 0.0
    %881 = vmatpush1.msra.mxu0 0.0
    %882 = vmatprep.subr.mxu0 0.0
    %883 = vmatpush1.msra.mxu0 0.0
    %884 = vmatprep.subr.mxu0 0.0
    %885 = vmatpush1.msra.mxu0 0.0
    %886 = vmatprep.subr.mxu0 0.0
    %887 = vmatpush1.msra.mxu0 0.0
    %888 = vmatprep.subr.mxu0 0.0
    %889 = vmatpush1.msra.mxu0 0.0
    %890 = vmatprep.subr.mxu0 0.0
    %891 = vmatpush1.msra.mxu0 0.0
    %892 = vmatprep.subr.mxu0 0.0
    %893 = vmatpush1.msra.mxu0 0.0
    %v894 = vand.u32 %v167, 4294901760
    %v895 = vsub.f32 %v167, %v894
    %v896 = vand.u32 %v895, 4294901760
    %897 = vmatprep.mubr.f32.mxu0 %v896
    %v898 = vand.u32 %v67, 4294901760
    %v899 = vsub.f32 %v67, %v898
    %v900 = vand.u32 %v899, 4294901760
    %901 = vmatmul.mubr.f32.gmra.mrb[0].mxu0 %v900
    %v902 = vpop.f32.mrb[0].mxu0
    %v903 = vadd.f32 %v778, %v902
    %v904 = vpop.f32.mrb[0].mxu0
    %v905 = vadd.f32 %v780, %v904
    %906 = vdwg.mxu0
    %v907 = vand.u32 %v70, 4294901760
    %v908 = vsub.f32 %v70, %v907
    %v909 = vand.u32 %v908, 4294901760
    %910 = vmatprep.subr.mxu0 %v909
    %v911 = vand.u32 %v69, 4294901760
    %v912 = vsub.f32 %v69, %v911
    %v913 = vand.u32 %v912, 4294901760
    %914 = vmatpush1.msra.mxu0 %v913
    %v915 = vand.u32 %v74, 4294901760
    %v916 = vsub.f32 %v74, %v915
    %v917 = vand.u32 %v916, 4294901760
    %918 = vmatprep.subr.mxu0 %v917
    %v919 = vand.u32 %v73, 4294901760
    %v920 = vsub.f32 %v73, %v919
    %v921 = vand.u32 %v920, 4294901760
    %922 = vmatpush1.msra.mxu0 %v921
    %v923 = vand.u32 %v78, 4294901760
    %v924 = vsub.f32 %v78, %v923
    %v925 = vand.u32 %v924, 4294901760
    %926 = vmatprep.subr.mxu0 %v925
    %v927 = vand.u32 %v77, 4294901760
    %v928 = vsub.f32 %v77, %v927
    %v929 = vand.u32 %v928, 4294901760
    %930 = vmatpush1.msra.mxu0 %v929
    %v931 = vand.u32 %v82, 4294901760
    %v932 = vsub.f32 %v82, %v931
    %v933 = vand.u32 %v932, 4294901760
    %934 = vmatprep.subr.mxu0 %v933
    %v935 = vand.u32 %v81, 4294901760
    %v936 = vsub.f32 %v81, %v935
    %v937 = vand.u32 %v936, 4294901760
    %938 = vmatpush1.msra.mxu0 %v937
    %v939 = vand.u32 %v86, 4294901760
    %v940 = vsub.f32 %v86, %v939
    %v941 = vand.u32 %v940, 4294901760
    %942 = vmatprep.subr.mxu0 %v941
    %v943 = vand.u32 %v85, 4294901760
    %v944 = vsub.f32 %v85, %v943
    %v945 = vand.u32 %v944, 4294901760
    %946 = vmatpush1.msra.mxu0 %v945
    %v947 = vand.u32 %v90, 4294901760
    %v948 = vsub.f32 %v90, %v947
    %v949 = vand.u32 %v948, 4294901760
    %950 = vmatprep.subr.mxu0 %v949
    %v951 = vand.u32 %v89, 4294901760
    %v952 = vsub.f32 %v89, %v951
    %v953 = vand.u32 %v952, 4294901760
    %954 = vmatpush1.msra.mxu0 %v953
    %v955 = vand.u32 %v94, 4294901760
    %v956 = vsub.f32 %v94, %v955
    %v957 = vand.u32 %v956, 4294901760
    %958 = vmatprep.subr.mxu0 %v957
    %v959 = vand.u32 %v93, 4294901760
    %v960 = vsub.f32 %v93, %v959
    %v961 = vand.u32 %v960, 4294901760
    %962 = vmatpush1.msra.mxu0 %v961
    %v963 = vand.u32 %v98, 4294901760
    %v964 = vsub.f32 %v98, %v963
    %v965 = vand.u32 %v964, 4294901760
    %966 = vmatprep.subr.mxu0 %v965
    %v967 = vand.u32 %v97, 4294901760
    %v968 = vsub.f32 %v97, %v967
    %v969 = vand.u32 %v968, 4294901760
    %970 = vmatpush1.msra.mxu0 %v969
    %v971 = vand.u32 %v102, 4294901760
    %v972 = vsub.f32 %v102, %v971
    %v973 = vand.u32 %v972, 4294901760
    %974 = vmatprep.subr.mxu0 %v973
    %v975 = vand.u32 %v101, 4294901760
    %v976 = vsub.f32 %v101, %v975
    %v977 = vand.u32 %v976, 4294901760
    %978 = vmatpush1.msra.mxu0 %v977
    %v979 = vand.u32 %v106, 4294901760
    %v980 = vsub.f32 %v106, %v979
    %v981 = vand.u32 %v980, 4294901760
    %982 = vmatprep.subr.mxu0 %v981
    %v983 = vand.u32 %v105, 4294901760
    %v984 = vsub.f32 %v105, %v983
    %v985 = vand.u32 %v984, 4294901760
    %986 = vmatpush1.msra.mxu0 %v985
    %v987 = vand.u32 %v110, 4294901760
    %v988 = vsub.f32 %v110, %v987
    %v989 = vand.u32 %v988, 4294901760
    %990 = vmatprep.subr.mxu0 %v989
    %v991 = vand.u32 %v109, 4294901760
    %v992 = vsub.f32 %v109, %v991
    %v993 = vand.u32 %v992, 4294901760
    %994 = vmatpush1.msra.mxu0 %v993
    %v995 = vand.u32 %v114, 4294901760
    %v996 = vsub.f32 %v114, %v995
    %v997 = vand.u32 %v996, 4294901760
    %998 = vmatprep.subr.mxu0 %v997
    %v999 = vand.u32 %v113, 4294901760
    %v1000 = vsub.f32 %v113, %v999
    %v1001 = vand.u32 %v1000, 4294901760
    %1002 = vmatpush1.msra.mxu0 %v1001
    %v1003 = vand.u32 %v118, 4294901760
    %v1004 = vsub.f32 %v118, %v1003
    %v1005 = vand.u32 %v1004, 4294901760
    %1006 = vmatprep.subr.mxu0 %v1005
    %v1007 = vand.u32 %v117, 4294901760
    %v1008 = vsub.f32 %v117, %v1007
    %v1009 = vand.u32 %v1008, 4294901760
    %1010 = vmatpush1.msra.mxu0 %v1009
    %v1011 = vand.u32 %v122, 4294901760
    %v1012 = vsub.f32 %v122, %v1011
    %v1013 = vand.u32 %v1012, 4294901760
    %1014 = vmatprep.subr.mxu0 %v1013
    %v1015 = vand.u32 %v121, 4294901760
    %v1016 = vsub.f32 %v121, %v1015
    %v1017 = vand.u32 %v1016, 4294901760
    %1018 = vmatpush1.msra.mxu0 %v1017
    %v1019 = vand.u32 %v126, 4294901760
    %v1020 = vsub.f32 %v126, %v1019
    %v1021 = vand.u32 %v1020, 4294901760
    %1022 = vmatprep.subr.mxu0 %v1021
    %v1023 = vand.u32 %v125, 4294901760
    %v1024 = vsub.f32 %v125, %v1023
    %v1025 = vand.u32 %v1024, 4294901760
    %1026 = vmatpush1.msra.mxu0 %v1025
    %v1027 = vand.u32 %v130, 4294901760
    %v1028 = vsub.f32 %v130, %v1027
    %v1029 = vand.u32 %v1028, 4294901760
    %1030 = vmatprep.subr.mxu0 %v1029
    %v1031 = vand.u32 %v129, 4294901760
    %v1032 = vsub.f32 %v129, %v1031
    %v1033 = vand.u32 %v1032, 4294901760
    %1034 = vmatpush1.msra.mxu0 %v1033
    %v1035 = vand.u32 %v134, 4294901760
    %v1036 = vsub.f32 %v134, %v1035
    %v1037 = vand.u32 %v1036, 4294901760
    %1038 = vmatprep.subr.mxu0 %v1037
    %v1039 = vand.u32 %v133, 4294901760
    %v1040 = vsub.f32 %v133, %v1039
    %v1041 = vand.u32 %v1040, 4294901760
    %1042 = vmatpush1.msra.mxu0 %v1041
    %v1043 = vand.u32 %v138, 4294901760
    %v1044 = vsub.f32 %v138, %v1043
    %v1045 = vand.u32 %v1044, 4294901760
    %1046 = vmatprep.subr.mxu0 %v1045
    %v1047 = vand.u32 %v137, 4294901760
    %v1048 = vsub.f32 %v137, %v1047
    %v1049 = vand.u32 %v1048, 4294901760
    %1050 = vmatpush1.msra.mxu0 %v1049
    %v1051 = vand.u32 %v142, 4294901760
    %v1052 = vsub.f32 %v142, %v1051
    %v1053 = vand.u32 %v1052, 4294901760
    %1054 = vmatprep.subr.mxu0 %v1053
    %v1055 = vand.u32 %v141, 4294901760
    %v1056 = vsub.f32 %v141, %v1055
    %v1057 = vand.u32 %v1056, 4294901760
    %1058 = vmatpush1.msra.mxu0 %v1057
    %v1059 = vand.u32 %v146, 4294901760
    %v1060 = vsub.f32 %v146, %v1059
    %v1061 = vand.u32 %v1060, 4294901760
    %1062 = vmatprep.subr.mxu0 %v1061
    %v1063 = vand.u32 %v145, 4294901760
    %v1064 = vsub.f32 %v145, %v1063
    %v1065 = vand.u32 %v1064, 4294901760
    %1066 = vmatpush1.msra.mxu0 %v1065
    %v1067 = vand.u32 %v150, 4294901760
    %v1068 = vsub.f32 %v150, %v1067
    %v1069 = vand.u32 %v1068, 4294901760
    %1070 = vmatprep.subr.mxu0 %v1069
    %v1071 = vand.u32 %v149, 4294901760
    %v1072 = vsub.f32 %v149, %v1071
    %v1073 = vand.u32 %v1072, 4294901760
    %1074 = vmatpush1.msra.mxu0 %v1073
    %v1075 = vand.u32 %v154, 4294901760
    %v1076 = vsub.f32 %v154, %v1075
    %v1077 = vand.u32 %v1076, 4294901760
    %1078 = vmatprep.subr.mxu0 %v1077
    %v1079 = vand.u32 %v153, 4294901760
    %v1080 = vsub.f32 %v153, %v1079
    %v1081 = vand.u32 %v1080, 4294901760
    %1082 = vmatpush1.msra.mxu0 %v1081
    %v1083 = vand.u32 %v158, 4294901760
    %v1084 = vsub.f32 %v158, %v1083
    %v1085 = vand.u32 %v1084, 4294901760
    %1086 = vmatprep.subr.mxu0 %v1085
    %v1087 = vand.u32 %v157, 4294901760
    %v1088 = vsub.f32 %v157, %v1087
    %v1089 = vand.u32 %v1088, 4294901760
    %1090 = vmatpush1.msra.mxu0 %v1089
    %v1091 = vand.u32 %v162, 4294901760
    %v1092 = vsub.f32 %v162, %v1091
    %v1093 = vand.u32 %v1092, 4294901760
    %1094 = vmatprep.subr.mxu0 %v1093
    %v1095 = vand.u32 %v161, 4294901760
    %v1096 = vsub.f32 %v161, %v1095
    %v1097 = vand.u32 %v1096, 4294901760
    %1098 = vmatpush1.msra.mxu0 %v1097
    %1099 = vmatprep.subr.mxu0 0.0
    %1100 = vmatpush1.msra.mxu0 0.0
    %1101 = vmatprep.subr.mxu0 0.0
    %1102 = vmatpush1.msra.mxu0 0.0
    %1103 = vmatprep.subr.mxu0 0.0
    %1104 = vmatpush1.msra.mxu0 0.0
    %1105 = vmatprep.subr.mxu0 0.0
    %1106 = vmatpush1.msra.mxu0 0.0
    %1107 = vmatprep.subr.mxu0 0.0
    %1108 = vmatpush1.msra.mxu0 0.0
    %1109 = vmatprep.subr.mxu0 0.0
    %1110 = vmatpush1.msra.mxu0 0.0
    %1111 = vmatprep.subr.mxu0 0.0
    %1112 = vmatpush1.msra.mxu0 0.0
    %1113 = vmatprep.subr.mxu0 0.0
    %1114 = vmatpush1.msra.mxu0 0.0
    %v1115 = vand.u32 %v167, 4294901760
    %1116 = vmatprep.mubr.f32.mxu0 %v1115
    %v1117 = vand.u32 %v67, 4294901760
    %1118 = vmatmul.mubr.f32.gmra.mrb[0].mxu0 %v1117
    %v1119 = vpop.f32.mrb[0].mxu0
    %v1120 = vadd.f32 %v903, %v1119
    %v1121 = vpop.f32.mrb[0].mxu0
    %v1122 = vadd.f32 %v905, %v1121
    %1123 = vdwg.mxu0
    %v1124 = vand.u32 %v70, 4294901760
    %1125 = vmatprep.subr.mxu0 %v1124
    %v1126 = vand.u32 %v69, 4294901760
    %1127 = vmatpush1.msra.mxu0 %v1126
    %v1128 = vand.u32 %v74, 4294901760
    %1129 = vmatprep.subr.mxu0 %v1128
    %v1130 = vand.u32 %v73, 4294901760
    %1131 = vmatpush1.msra.mxu0 %v1130
    %v1132 = vand.u32 %v78, 4294901760
    %1133 = vmatprep.subr.mxu0 %v1132
    %v1134 = vand.u32 %v77, 4294901760
    %1135 = vmatpush1.msra.mxu0 %v1134
    %v1136 = vand.u32 %v82, 4294901760
    %1137 = vmatprep.subr.mxu0 %v1136
    %v1138 = vand.u32 %v81, 4294901760
    %1139 = vmatpush1.msra.mxu0 %v1138
    %v1140 = vand.u32 %v86, 4294901760
    %1141 = vmatprep.subr.mxu0 %v1140
    %v1142 = vand.u32 %v85, 4294901760
    %1143 = vmatpush1.msra.mxu0 %v1142
    %v1144 = vand.u32 %v90, 4294901760
    %1145 = vmatprep.subr.mxu0 %v1144
    %v1146 = vand.u32 %v89, 4294901760
    %1147 = vmatpush1.msra.mxu0 %v1146
    %v1148 = vand.u32 %v94, 4294901760
    %1149 = vmatprep.subr.mxu0 %v1148
    %v1150 = vand.u32 %v93, 4294901760
    %1151 = vmatpush1.msra.mxu0 %v1150
    %v1152 = vand.u32 %v98, 4294901760
    %1153 = vmatprep.subr.mxu0 %v1152
    %v1154 = vand.u32 %v97, 4294901760
    %1155 = vmatpush1.msra.mxu0 %v1154
    %v1156 = vand.u32 %v102, 4294901760
    %1157 = vmatprep.subr.mxu0 %v1156
    %v1158 = vand.u32 %v101, 4294901760
    %1159 = vmatpush1.msra.mxu0 %v1158
    %v1160 = vand.u32 %v106, 4294901760
    %1161 = vmatprep.subr.mxu0 %v1160
    %v1162 = vand.u32 %v105, 4294901760
    %1163 = vmatpush1.msra.mxu0 %v1162
    %v1164 = vand.u32 %v110, 4294901760
    %1165 = vmatprep.subr.mxu0 %v1164
    %v1166 = vand.u32 %v109, 4294901760
    %1167 = vmatpush1.msra.mxu0 %v1166
    %v1168 = vand.u32 %v114, 4294901760
    %1169 = vmatprep.subr.mxu0 %v1168
    %v1170 = vand.u32 %v113, 4294901760
    %1171 = vmatpush1.msra.mxu0 %v1170
    %v1172 = vand.u32 %v118, 4294901760
    %1173 = vmatprep.subr.mxu0 %v1172
    %v1174 = vand.u32 %v117, 4294901760
    %1175 = vmatpush1.msra.mxu0 %v1174
    %v1176 = vand.u32 %v122, 4294901760
    %1177 = vmatprep.subr.mxu0 %v1176
    %v1178 = vand.u32 %v121, 4294901760
    %1179 = vmatpush1.msra.mxu0 %v1178
    %v1180 = vand.u32 %v126, 4294901760
    %1181 = vmatprep.subr.mxu0 %v1180
    %v1182 = vand.u32 %v125, 4294901760
    %1183 = vmatpush1.msra.mxu0 %v1182
    %v1184 = vand.u32 %v130, 4294901760
    %1185 = vmatprep.subr.mxu0 %v1184
    %v1186 = vand.u32 %v129, 4294901760
    %1187 = vmatpush1.msra.mxu0 %v1186
    %v1188 = vand.u32 %v134, 4294901760
    %1189 = vmatprep.subr.mxu0 %v1188
    %v1190 = vand.u32 %v133, 4294901760
    %1191 = vmatpush1.msra.mxu0 %v1190
    %v1192 = vand.u32 %v138, 4294901760
    %1193 = vmatprep.subr.mxu0 %v1192
    %v1194 = vand.u32 %v137, 4294901760
    %1195 = vmatpush1.msra.mxu0 %v1194
    %v1196 = vand.u32 %v142, 4294901760
    %1197 = vmatprep.subr.mxu0 %v1196
    %v1198 = vand.u32 %v141, 4294901760
    %1199 = vmatpush1.msra.mxu0 %v1198
    %v1200 = vand.u32 %v146, 4294901760
    %1201 = vmatprep.subr.mxu0 %v1200
    %v1202 = vand.u32 %v145, 4294901760
    %1203 = vmatpush1.msra.mxu0 %v1202
    %v1204 = vand.u32 %v150, 4294901760
    %1205 = vmatprep.subr.mxu0 %v1204
    %v1206 = vand.u32 %v149, 4294901760
    %1207 = vmatpush1.msra.mxu0 %v1206
    %v1208 = vand.u32 %v154, 4294901760
    %1209 = vmatprep.subr.mxu0 %v1208
    %v1210 = vand.u32 %v153, 4294901760
    %1211 = vmatpush1.msra.mxu0 %v1210
    %v1212 = vand.u32 %v158, 4294901760
    %1213 = vmatprep.subr.mxu0 %v1212
    %v1214 = vand.u32 %v157, 4294901760
    %1215 = vmatpush1.msra.mxu0 %v1214
    %v1216 = vand.u32 %v162, 4294901760
    %1217 = vmatprep.subr.mxu0 %v1216
    %v1218 = vand.u32 %v161, 4294901760
    %1219 = vmatpush1.msra.mxu0 %v1218
    %1220 = vmatprep.subr.mxu0 0.0
    %1221 = vmatpush1.msra.mxu0 0.0
    %1222 = vmatprep.subr.mxu0 0.0
    %1223 = vmatpush1.msra.mxu0 0.0
    %1224 = vmatprep.subr.mxu0 0.0
    %1225 = vmatpush1.msra.mxu0 0.0
    %1226 = vmatprep.subr.mxu0 0.0
    %1227 = vmatpush1.msra.mxu0 0.0
    %1228 = vmatprep.subr.mxu0 0.0
    %1229 = vmatpush1.msra.mxu0 0.0
    %1230 = vmatprep.subr.mxu0 0.0
    %1231 = vmatpush1.msra.mxu0 0.0
    %1232 = vmatprep.subr.mxu0 0.0
    %1233 = vmatpush1.msra.mxu0 0.0
    %1234 = vmatprep.subr.mxu0 0.0
    %1235 = vmatpush1.msra.mxu0 0.0
    %v1236 = vand.u32 %v167, 4294901760
    %1237 = vmatprep.mubr.f32.mxu0 %v1236
    %v1238 = vand.u32 %v67, 4294901760
    %1239 = vmatmul.mubr.f32.gmra.mrb[0].mxu0 %v1238
    %v1240 = vpop.f32.mrb[0].mxu0
    %v1241 = vadd.f32 %v1120, %v1240
    %v1242 = vpop.f32.mrb[0].mxu0
    %v1243 = vadd.f32 %v1122, %v1242
    %1244 = vdwg.mxu0
    %v1245 = vand.u32 %v72, 4294901760
    %1246 = vmatprep.subr.mxu0 %v1245
    %v1247 = vand.u32 %v71, 4294901760
    %1248 = vmatpush1.msra.mxu0 %v1247
    %v1249 = vand.u32 %v76, 4294901760
    %1250 = vmatprep.subr.mxu0 %v1249
    %v1251 = vand.u32 %v75, 4294901760
    %1252 = vmatpush1.msra.mxu0 %v1251
    %v1253 = vand.u32 %v80, 4294901760
    %1254 = vmatprep.subr.mxu0 %v1253
    %v1255 = vand.u32 %v79, 4294901760
    %1256 = vmatpush1.msra.mxu0 %v1255
    %v1257 = vand.u32 %v84, 4294901760
    %1258 = vmatprep.subr.mxu0 %v1257
    %v1259 = vand.u32 %v83, 4294901760
    %1260 = vmatpush1.msra.mxu0 %v1259
    %v1261 = vand.u32 %v88, 4294901760
    %1262 = vmatprep.subr.mxu0 %v1261
    %v1263 = vand.u32 %v87, 4294901760
    %1264 = vmatpush1.msra.mxu0 %v1263
    %v1265 = vand.u32 %v92, 4294901760
    %1266 = vmatprep.subr.mxu0 %v1265
    %v1267 = vand.u32 %v91, 4294901760
    %1268 = vmatpush1.msra.mxu0 %v1267
    %v1269 = vand.u32 %v96, 4294901760
    %1270 = vmatprep.subr.mxu0 %v1269
    %v1271 = vand.u32 %v95, 4294901760
    %1272 = vmatpush1.msra.mxu0 %v1271
    %v1273 = vand.u32 %v100, 4294901760
    %1274 = vmatprep.subr.mxu0 %v1273
    %v1275 = vand.u32 %v99, 4294901760
    %1276 = vmatpush1.msra.mxu0 %v1275
    %v1277 = vand.u32 %v104, 4294901760
    %1278 = vmatprep.subr.mxu0 %v1277
    %v1279 = vand.u32 %v103, 4294901760
    %1280 = vmatpush1.msra.mxu0 %v1279
    %v1281 = vand.u32 %v108, 4294901760
    %1282 = vmatprep.subr.mxu0 %v1281
    %v1283 = vand.u32 %v107, 4294901760
    %1284 = vmatpush1.msra.mxu0 %v1283
    %v1285 = vand.u32 %v112, 4294901760
    %1286 = vmatprep.subr.mxu0 %v1285
    %v1287 = vand.u32 %v111, 4294901760
    %1288 = vmatpush1.msra.mxu0 %v1287
    %v1289 = vand.u32 %v116, 4294901760
    %1290 = vmatprep.subr.mxu0 %v1289
    %v1291 = vand.u32 %v115, 4294901760
    %1292 = vmatpush1.msra.mxu0 %v1291
    %v1293 = vand.u32 %v120, 4294901760
    %1294 = vmatprep.subr.mxu0 %v1293
    %v1295 = vand.u32 %v119, 4294901760
    %1296 = vmatpush1.msra.mxu0 %v1295
    %v1297 = vand.u32 %v124, 4294901760
    %1298 = vmatprep.subr.mxu0 %v1297
    %v1299 = vand.u32 %v123, 4294901760
    %1300 = vmatpush1.msra.mxu0 %v1299
    %v1301 = vand.u32 %v128, 4294901760
    %1302 = vmatprep.subr.mxu0 %v1301
    %v1303 = vand.u32 %v127, 4294901760
    %1304 = vmatpush1.msra.mxu0 %v1303
    %v1305 = vand.u32 %v132, 4294901760
    %1306 = vmatprep.subr.mxu0 %v1305
    %v1307 = vand.u32 %v131, 4294901760
    %1308 = vmatpush1.msra.mxu0 %v1307
    %v1309 = vand.u32 %v136, 4294901760
    %1310 = vmatprep.subr.mxu0 %v1309
    %v1311 = vand.u32 %v135, 4294901760
    %1312 = vmatpush1.msra.mxu0 %v1311
    %v1313 = vand.u32 %v140, 4294901760
    %1314 = vmatprep.subr.mxu0 %v1313
    %v1315 = vand.u32 %v139, 4294901760
    %1316 = vmatpush1.msra.mxu0 %v1315
    %v1317 = vand.u32 %v144, 4294901760
    %1318 = vmatprep.subr.mxu0 %v1317
    %v1319 = vand.u32 %v143, 4294901760
    %1320 = vmatpush1.msra.mxu0 %v1319
    %v1321 = vand.u32 %v148, 4294901760
    %1322 = vmatprep.subr.mxu0 %v1321
    %v1323 = vand.u32 %v147, 4294901760
    %1324 = vmatpush1.msra.mxu0 %v1323
    %v1325 = vand.u32 %v152, 4294901760
    %1326 = vmatprep.subr.mxu0 %v1325
    %v1327 = vand.u32 %v151, 4294901760
    %1328 = vmatpush1.msra.mxu0 %v1327
    %v1329 = vand.u32 %v156, 4294901760
    %1330 = vmatprep.subr.mxu0 %v1329
    %v1331 = vand.u32 %v155, 4294901760
    %1332 = vmatpush1.msra.mxu0 %v1331
    %v1333 = vand.u32 %v160, 4294901760
    %1334 = vmatprep.subr.mxu0 %v1333
    %v1335 = vand.u32 %v159, 4294901760
    %1336 = vmatpush1.msra.mxu0 %v1335
    %v1337 = vand.u32 %v164, 4294901760
    %1338 = vmatprep.subr.mxu0 %v1337
    %v1339 = vand.u32 %v163, 4294901760
    %1340 = vmatpush1.msra.mxu0 %v1339
    %1341 = vmatprep.subr.mxu0 0.0
    %1342 = vmatpush1.msra.mxu0 0.0
    %1343 = vmatprep.subr.mxu0 0.0
    %1344 = vmatpush1.msra.mxu0 0.0
    %1345 = vmatprep.subr.mxu0 0.0
    %1346 = vmatpush1.msra.mxu0 0.0
    %1347 = vmatprep.subr.mxu0 0.0
    %1348 = vmatpush1.msra.mxu0 0.0
    %1349 = vmatprep.subr.mxu0 0.0
    %1350 = vmatpush1.msra.mxu0 0.0
    %1351 = vmatprep.subr.mxu0 0.0
    %1352 = vmatpush1.msra.mxu0 0.0
    %1353 = vmatprep.subr.mxu0 0.0
    %1354 = vmatpush1.msra.mxu0 0.0
    %1355 = vmatprep.subr.mxu0 0.0
    %1356 = vmatpush1.msra.mxu0 0.0
    %v1357 = vand.u32 %v167, 4294901760
    %v1358 = vsub.f32 %v167, %v1357
    %v1359 = vand.u32 %v1358, 4294901760
    %v1360 = vsub.f32 %v1358, %v1359
    %v1361 = vand.u32 %v1360, 4294901760
    %1362 = vmatprep.mubr.f32.mxu0 %v1361
    %v1363 = vand.u32 %v67, 4294901760
    %v1364 = vsub.f32 %v67, %v1363
    %v1365 = vand.u32 %v1364, 4294901760
    %v1366 = vsub.f32 %v1364, %v1365
    %v1367 = vand.u32 %v1366, 4294901760
    %1368 = vmatmul.mubr.f32.gmra.mrb[0].mxu0 %v1367
    %v1369 = vpop.f32.mrb[0].mxu0
    %v1370 = vadd.f32 0.0, %v1369
    %v1371 = vpop.f32.mrb[0].mxu0
    %v1372 = vadd.f32 0.0, %v1371
    %1373 = vdwg.mxu0
    %v1374 = vand.u32 %v72, 4294901760
    %v1375 = vsub.f32 %v72, %v1374
    %v1376 = vand.u32 %v1375, 4294901760
    %v1377 = vsub.f32 %v1375, %v1376
    %v1378 = vand.u32 %v1377, 4294901760
    %1379 = vmatprep.subr.mxu0 %v1378
    %v1380 = vand.u32 %v71, 4294901760
    %v1381 = vsub.f32 %v71, %v1380
    %v1382 = vand.u32 %v1381, 4294901760
    %v1383 = vsub.f32 %v1381, %v1382
    %v1384 = vand.u32 %v1383, 4294901760
    %1385 = vmatpush1.msra.mxu0 %v1384
    %v1386 = vand.u32 %v76, 4294901760
    %v1387 = vsub.f32 %v76, %v1386
    %v1388 = vand.u32 %v1387, 4294901760
    %v1389 = vsub.f32 %v1387, %v1388
    %v1390 = vand.u32 %v1389, 4294901760
    %1391 = vmatprep.subr.mxu0 %v1390
    %v1392 = vand.u32 %v75, 4294901760
    %v1393 = vsub.f32 %v75, %v1392
    %v1394 = vand.u32 %v1393, 4294901760
    %v1395 = vsub.f32 %v1393, %v1394
    %v1396 = vand.u32 %v1395, 4294901760
    %1397 = vmatpush1.msra.mxu0 %v1396
    %v1398 = vand.u32 %v80, 4294901760
    %v1399 = vsub.f32 %v80, %v1398
    %v1400 = vand.u32 %v1399, 4294901760
    %v1401 = vsub.f32 %v1399, %v1400
    %v1402 = vand.u32 %v1401, 4294901760
    %1403 = vmatprep.subr.mxu0 %v1402
    %v1404 = vand.u32 %v79, 4294901760
    %v1405 = vsub.f32 %v79, %v1404
    %v1406 = vand.u32 %v1405, 4294901760
    %v1407 = vsub.f32 %v1405, %v1406
    %v1408 = vand.u32 %v1407, 4294901760
    %1409 = vmatpush1.msra.mxu0 %v1408
    %v1410 = vand.u32 %v84, 4294901760
    %v1411 = vsub.f32 %v84, %v1410
    %v1412 = vand.u32 %v1411, 4294901760
    %v1413 = vsub.f32 %v1411, %v1412
    %v1414 = vand.u32 %v1413, 4294901760
    %1415 = vmatprep.subr.mxu0 %v1414
    %v1416 = vand.u32 %v83, 4294901760
    %v1417 = vsub.f32 %v83, %v1416
    %v1418 = vand.u32 %v1417, 4294901760
    %v1419 = vsub.f32 %v1417, %v1418
    %v1420 = vand.u32 %v1419, 4294901760
    %1421 = vmatpush1.msra.mxu0 %v1420
    %v1422 = vand.u32 %v88, 4294901760
    %v1423 = vsub.f32 %v88, %v1422
    %v1424 = vand.u32 %v1423, 4294901760
    %v1425 = vsub.f32 %v1423, %v1424
    %v1426 = vand.u32 %v1425, 4294901760
    %1427 = vmatprep.subr.mxu0 %v1426
    %v1428 = vand.u32 %v87, 4294901760
    %v1429 = vsub.f32 %v87, %v1428
    %v1430 = vand.u32 %v1429, 4294901760
    %v1431 = vsub.f32 %v1429, %v1430
    %v1432 = vand.u32 %v1431, 4294901760
    %1433 = vmatpush1.msra.mxu0 %v1432
    %v1434 = vand.u32 %v92, 4294901760
    %v1435 = vsub.f32 %v92, %v1434
    %v1436 = vand.u32 %v1435, 4294901760
    %v1437 = vsub.f32 %v1435, %v1436
    %v1438 = vand.u32 %v1437, 4294901760
    %1439 = vmatprep.subr.mxu0 %v1438
    %v1440 = vand.u32 %v91, 4294901760
    %v1441 = vsub.f32 %v91, %v1440
    %v1442 = vand.u32 %v1441, 4294901760
    %v1443 = vsub.f32 %v1441, %v1442
    %v1444 = vand.u32 %v1443, 4294901760
    %1445 = vmatpush1.msra.mxu0 %v1444
    %v1446 = vand.u32 %v96, 4294901760
    %v1447 = vsub.f32 %v96, %v1446
    %v1448 = vand.u32 %v1447, 4294901760
    %v1449 = vsub.f32 %v1447, %v1448
    %v1450 = vand.u32 %v1449, 4294901760
    %1451 = vmatprep.subr.mxu0 %v1450
    %v1452 = vand.u32 %v95, 4294901760
    %v1453 = vsub.f32 %v95, %v1452
    %v1454 = vand.u32 %v1453, 4294901760
    %v1455 = vsub.f32 %v1453, %v1454
    %v1456 = vand.u32 %v1455, 4294901760
    %1457 = vmatpush1.msra.mxu0 %v1456
    %v1458 = vand.u32 %v100, 4294901760
    %v1459 = vsub.f32 %v100, %v1458
    %v1460 = vand.u32 %v1459, 4294901760
    %v1461 = vsub.f32 %v1459, %v1460
    %v1462 = vand.u32 %v1461, 4294901760
    %1463 = vmatprep.subr.mxu0 %v1462
    %v1464 = vand.u32 %v99, 4294901760
    %v1465 = vsub.f32 %v99, %v1464
    %v1466 = vand.u32 %v1465, 4294901760
    %v1467 = vsub.f32 %v1465, %v1466
    %v1468 = vand.u32 %v1467, 4294901760
    %1469 = vmatpush1.msra.mxu0 %v1468
    %v1470 = vand.u32 %v104, 4294901760
    %v1471 = vsub.f32 %v104, %v1470
    %v1472 = vand.u32 %v1471, 4294901760
    %v1473 = vsub.f32 %v1471, %v1472
    %v1474 = vand.u32 %v1473, 4294901760
    %1475 = vmatprep.subr.mxu0 %v1474
    %v1476 = vand.u32 %v103, 4294901760
    %v1477 = vsub.f32 %v103, %v1476
    %v1478 = vand.u32 %v1477, 4294901760
    %v1479 = vsub.f32 %v1477, %v1478
    %v1480 = vand.u32 %v1479, 4294901760
    %1481 = vmatpush1.msra.mxu0 %v1480
    %v1482 = vand.u32 %v108, 4294901760
    %v1483 = vsub.f32 %v108, %v1482
    %v1484 = vand.u32 %v1483, 4294901760
    %v1485 = vsub.f32 %v1483, %v1484
    %v1486 = vand.u32 %v1485, 4294901760
    %1487 = vmatprep.subr.mxu0 %v1486
    %v1488 = vand.u32 %v107, 4294901760
    %v1489 = vsub.f32 %v107, %v1488
    %v1490 = vand.u32 %v1489, 4294901760
    %v1491 = vsub.f32 %v1489, %v1490
    %v1492 = vand.u32 %v1491, 4294901760
    %1493 = vmatpush1.msra.mxu0 %v1492
    %v1494 = vand.u32 %v112, 4294901760
    %v1495 = vsub.f32 %v112, %v1494
    %v1496 = vand.u32 %v1495, 4294901760
    %v1497 = vsub.f32 %v1495, %v1496
    %v1498 = vand.u32 %v1497, 4294901760
    %1499 = vmatprep.subr.mxu0 %v1498
    %v1500 = vand.u32 %v111, 4294901760
    %v1501 = vsub.f32 %v111, %v1500
    %v1502 = vand.u32 %v1501, 4294901760
    %v1503 = vsub.f32 %v1501, %v1502
    %v1504 = vand.u32 %v1503, 4294901760
    %1505 = vmatpush1.msra.mxu0 %v1504
    %v1506 = vand.u32 %v116, 4294901760
    %v1507 = vsub.f32 %v116, %v1506
    %v1508 = vand.u32 %v1507, 4294901760
    %v1509 = vsub.f32 %v1507, %v1508
    %v1510 = vand.u32 %v1509, 4294901760
    %1511 = vmatprep.subr.mxu0 %v1510
    %v1512 = vand.u32 %v115, 4294901760
    %v1513 = vsub.f32 %v115, %v1512
    %v1514 = vand.u32 %v1513, 4294901760
    %v1515 = vsub.f32 %v1513, %v1514
    %v1516 = vand.u32 %v1515, 4294901760
    %1517 = vmatpush1.msra.mxu0 %v1516
    %v1518 = vand.u32 %v120, 4294901760
    %v1519 = vsub.f32 %v120, %v1518
    %v1520 = vand.u32 %v1519, 4294901760
    %v1521 = vsub.f32 %v1519, %v1520
    %v1522 = vand.u32 %v1521, 4294901760
    %1523 = vmatprep.subr.mxu0 %v1522
    %v1524 = vand.u32 %v119, 4294901760
    %v1525 = vsub.f32 %v119, %v1524
    %v1526 = vand.u32 %v1525, 4294901760
    %v1527 = vsub.f32 %v1525, %v1526
    %v1528 = vand.u32 %v1527, 4294901760
    %1529 = vmatpush1.msra.mxu0 %v1528
    %v1530 = vand.u32 %v124, 4294901760
    %v1531 = vsub.f32 %v124, %v1530
    %v1532 = vand.u32 %v1531, 4294901760
    %v1533 = vsub.f32 %v1531, %v1532
    %v1534 = vand.u32 %v1533, 4294901760
    %1535 = vmatprep.subr.mxu0 %v1534
    %v1536 = vand.u32 %v123, 4294901760
    %v1537 = vsub.f32 %v123, %v1536
    %v1538 = vand.u32 %v1537, 4294901760
    %v1539 = vsub.f32 %v1537, %v1538
    %v1540 = vand.u32 %v1539, 4294901760
    %1541 = vmatpush1.msra.mxu0 %v1540
    %v1542 = vand.u32 %v128, 4294901760
    %v1543 = vsub.f32 %v128, %v1542
    %v1544 = vand.u32 %v1543, 4294901760
    %v1545 = vsub.f32 %v1543, %v1544
    %v1546 = vand.u32 %v1545, 4294901760
    %1547 = vmatprep.subr.mxu0 %v1546
    %v1548 = vand.u32 %v127, 4294901760
    %v1549 = vsub.f32 %v127, %v1548
    %v1550 = vand.u32 %v1549, 4294901760
    %v1551 = vsub.f32 %v1549, %v1550
    %v1552 = vand.u32 %v1551, 4294901760
    %1553 = vmatpush1.msra.mxu0 %v1552
    %v1554 = vand.u32 %v132, 4294901760
    %v1555 = vsub.f32 %v132, %v1554
    %v1556 = vand.u32 %v1555, 4294901760
    %v1557 = vsub.f32 %v1555, %v1556
    %v1558 = vand.u32 %v1557, 4294901760
    %1559 = vmatprep.subr.mxu0 %v1558
    %v1560 = vand.u32 %v131, 4294901760
    %v1561 = vsub.f32 %v131, %v1560
    %v1562 = vand.u32 %v1561, 4294901760
    %v1563 = vsub.f32 %v1561, %v1562
    %v1564 = vand.u32 %v1563, 4294901760
    %1565 = vmatpush1.msra.mxu0 %v1564
    %v1566 = vand.u32 %v136, 4294901760
    %v1567 = vsub.f32 %v136, %v1566
    %v1568 = vand.u32 %v1567, 4294901760
    %v1569 = vsub.f32 %v1567, %v1568
    %v1570 = vand.u32 %v1569, 4294901760
    %1571 = vmatprep.subr.mxu0 %v1570
    %v1572 = vand.u32 %v135, 4294901760
    %v1573 = vsub.f32 %v135, %v1572
    %v1574 = vand.u32 %v1573, 4294901760
    %v1575 = vsub.f32 %v1573, %v1574
    %v1576 = vand.u32 %v1575, 4294901760
    %1577 = vmatpush1.msra.mxu0 %v1576
    %v1578 = vand.u32 %v140, 4294901760
    %v1579 = vsub.f32 %v140, %v1578
    %v1580 = vand.u32 %v1579, 4294901760
    %v1581 = vsub.f32 %v1579, %v1580
    %v1582 = vand.u32 %v1581, 4294901760
    %1583 = vmatprep.subr.mxu0 %v1582
    %v1584 = vand.u32 %v139, 4294901760
    %v1585 = vsub.f32 %v139, %v1584
    %v1586 = vand.u32 %v1585, 4294901760
    %v1587 = vsub.f32 %v1585, %v1586
    %v1588 = vand.u32 %v1587, 4294901760
    %1589 = vmatpush1.msra.mxu0 %v1588
    %v1590 = vand.u32 %v144, 4294901760
    %v1591 = vsub.f32 %v144, %v1590
    %v1592 = vand.u32 %v1591, 4294901760
    %v1593 = vsub.f32 %v1591, %v1592
    %v1594 = vand.u32 %v1593, 4294901760
    %1595 = vmatprep.subr.mxu0 %v1594
    %v1596 = vand.u32 %v143, 4294901760
    %v1597 = vsub.f32 %v143, %v1596
    %v1598 = vand.u32 %v1597, 4294901760
    %v1599 = vsub.f32 %v1597, %v1598
    %v1600 = vand.u32 %v1599, 4294901760
    %1601 = vmatpush1.msra.mxu0 %v1600
    %v1602 = vand.u32 %v148, 4294901760
    %v1603 = vsub.f32 %v148, %v1602
    %v1604 = vand.u32 %v1603, 4294901760
    %v1605 = vsub.f32 %v1603, %v1604
    %v1606 = vand.u32 %v1605, 4294901760
    %1607 = vmatprep.subr.mxu0 %v1606
    %v1608 = vand.u32 %v147, 4294901760
    %v1609 = vsub.f32 %v147, %v1608
    %v1610 = vand.u32 %v1609, 4294901760
    %v1611 = vsub.f32 %v1609, %v1610
    %v1612 = vand.u32 %v1611, 4294901760
    %1613 = vmatpush1.msra.mxu0 %v1612
    %v1614 = vand.u32 %v152, 4294901760
    %v1615 = vsub.f32 %v152, %v1614
    %v1616 = vand.u32 %v1615, 4294901760
    %v1617 = vsub.f32 %v1615, %v1616
    %v1618 = vand.u32 %v1617, 4294901760
    %1619 = vmatprep.subr.mxu0 %v1618
    %v1620 = vand.u32 %v151, 4294901760
    %v1621 = vsub.f32 %v151, %v1620
    %v1622 = vand.u32 %v1621, 4294901760
    %v1623 = vsub.f32 %v1621, %v1622
    %v1624 = vand.u32 %v1623, 4294901760
    %1625 = vmatpush1.msra.mxu0 %v1624
    %v1626 = vand.u32 %v156, 4294901760
    %v1627 = vsub.f32 %v156, %v1626
    %v1628 = vand.u32 %v1627, 4294901760
    %v1629 = vsub.f32 %v1627, %v1628
    %v1630 = vand.u32 %v1629, 4294901760
    %1631 = vmatprep.subr.mxu0 %v1630
    %v1632 = vand.u32 %v155, 4294901760
    %v1633 = vsub.f32 %v155, %v1632
    %v1634 = vand.u32 %v1633, 4294901760
    %v1635 = vsub.f32 %v1633, %v1634
    %v1636 = vand.u32 %v1635, 4294901760
    %1637 = vmatpush1.msra.mxu0 %v1636
    %v1638 = vand.u32 %v160, 4294901760
    %v1639 = vsub.f32 %v160, %v1638
    %v1640 = vand.u32 %v1639, 4294901760
    %v1641 = vsub.f32 %v1639, %v1640
    %v1642 = vand.u32 %v1641, 4294901760
    %1643 = vmatprep.subr.mxu0 %v1642
    %v1644 = vand.u32 %v159, 4294901760
    %v1645 = vsub.f32 %v159, %v1644
    %v1646 = vand.u32 %v1645, 4294901760
    %v1647 = vsub.f32 %v1645, %v1646
    %v1648 = vand.u32 %v1647, 4294901760
    %1649 = vmatpush1.msra.mxu0 %v1648
    %v1650 = vand.u32 %v164, 4294901760
    %v1651 = vsub.f32 %v164, %v1650
    %v1652 = vand.u32 %v1651, 4294901760
    %v1653 = vsub.f32 %v1651, %v1652
    %v1654 = vand.u32 %v1653, 4294901760
    %1655 = vmatprep.subr.mxu0 %v1654
    %v1656 = vand.u32 %v163, 4294901760
    %v1657 = vsub.f32 %v163, %v1656
    %v1658 = vand.u32 %v1657, 4294901760
    %v1659 = vsub.f32 %v1657, %v1658
    %v1660 = vand.u32 %v1659, 4294901760
    %1661 = vmatpush1.msra.mxu0 %v1660
    %1662 = vmatprep.subr.mxu0 0.0
    %1663 = vmatpush1.msra.mxu0 0.0
    %1664 = vmatprep.subr.mxu0 0.0
    %1665 = vmatpush1.msra.mxu0 0.0
    %1666 = vmatprep.subr.mxu0 0.0
    %1667 = vmatpush1.msra.mxu0 0.0
    %1668 = vmatprep.subr.mxu0 0.0
    %1669 = vmatpush1.msra.mxu0 0.0
    %1670 = vmatprep.subr.mxu0 0.0
    %1671 = vmatpush1.msra.mxu0 0.0
    %1672 = vmatprep.subr.mxu0 0.0
    %1673 = vmatpush1.msra.mxu0 0.0
    %1674 = vmatprep.subr.mxu0 0.0
    %1675 = vmatpush1.msra.mxu0 0.0
    %1676 = vmatprep.subr.mxu0 0.0
    %1677 = vmatpush1.msra.mxu0 0.0
    %v1678 = vand.u32 %v167, 4294901760
    %1679 = vmatprep.mubr.f32.mxu0 %v1678
    %v1680 = vand.u32 %v67, 4294901760
    %1681 = vmatmul.mubr.f32.gmra.mrb[0].mxu0 %v1680
    %v1682 = vpop.f32.mrb[0].mxu0
    %v1683 = vadd.f32 %v1370, %v1682
    %v1684 = vpop.f32.mrb[0].mxu0
    %v1685 = vadd.f32 %v1372, %v1684
    %1686 = vdwg.mxu0
    %v1687 = vand.u32 %v72, 4294901760
    %v1688 = vsub.f32 %v72, %v1687
    %1689 = vmatprep.subr.mxu0 %v1688
    %v1690 = vand.u32 %v71, 4294901760
    %v1691 = vsub.f32 %v71, %v1690
    %1692 = vmatpush1.msra.mxu0 %v1691
    %v1693 = vand.u32 %v76, 4294901760
    %v1694 = vsub.f32 %v76, %v1693
    %1695 = vmatprep.subr.mxu0 %v1694
    %v1696 = vand.u32 %v75, 4294901760
    %v1697 = vsub.f32 %v75, %v1696
    %1698 = vmatpush1.msra.mxu0 %v1697
    %v1699 = vand.u32 %v80, 4294901760
    %v1700 = vsub.f32 %v80, %v1699
    %1701 = vmatprep.subr.mxu0 %v1700
    %v1702 = vand.u32 %v79, 4294901760
    %v1703 = vsub.f32 %v79, %v1702
    %1704 = vmatpush1.msra.mxu0 %v1703
    %v1705 = vand.u32 %v84, 4294901760
    %v1706 = vsub.f32 %v84, %v1705
    %1707 = vmatprep.subr.mxu0 %v1706
    %v1708 = vand.u32 %v83, 4294901760
    %v1709 = vsub.f32 %v83, %v1708
    %1710 = vmatpush1.msra.mxu0 %v1709
    %v1711 = vand.u32 %v88, 4294901760
    %v1712 = vsub.f32 %v88, %v1711
    %1713 = vmatprep.subr.mxu0 %v1712
    %v1714 = vand.u32 %v87, 4294901760
    %v1715 = vsub.f32 %v87, %v1714
    %1716 = vmatpush1.msra.mxu0 %v1715
    %v1717 = vand.u32 %v92, 4294901760
    %v1718 = vsub.f32 %v92, %v1717
    %1719 = vmatprep.subr.mxu0 %v1718
    %v1720 = vand.u32 %v91, 4294901760
    %v1721 = vsub.f32 %v91, %v1720
    %1722 = vmatpush1.msra.mxu0 %v1721
    %v1723 = vand.u32 %v96, 4294901760
    %v1724 = vsub.f32 %v96, %v1723
    %1725 = vmatprep.subr.mxu0 %v1724
    %v1726 = vand.u32 %v95, 4294901760
    %v1727 = vsub.f32 %v95, %v1726
    %1728 = vmatpush1.msra.mxu0 %v1727
    %v1729 = vand.u32 %v100, 4294901760
    %v1730 = vsub.f32 %v100, %v1729
    %1731 = vmatprep.subr.mxu0 %v1730
    %v1732 = vand.u32 %v99, 4294901760
    %v1733 = vsub.f32 %v99, %v1732
    %1734 = vmatpush1.msra.mxu0 %v1733
    %v1735 = vand.u32 %v104, 4294901760
    %v1736 = vsub.f32 %v104, %v1735
    %1737 = vmatprep.subr.mxu0 %v1736
    %v1738 = vand.u32 %v103, 4294901760
    %v1739 = vsub.f32 %v103, %v1738
    %1740 = vmatpush1.msra.mxu0 %v1739
    %v1741 = vand.u32 %v108, 4294901760
    %v1742 = vsub.f32 %v108, %v1741
    %1743 = vmatprep.subr.mxu0 %v1742
    %v1744 = vand.u32 %v107, 4294901760
    %v1745 = vsub.f32 %v107, %v1744
    %1746 = vmatpush1.msra.mxu0 %v1745
    %v1747 = vand.u32 %v112, 4294901760
    %v1748 = vsub.f32 %v112, %v1747
    %1749 = vmatprep.subr.mxu0 %v1748
    %v1750 = vand.u32 %v111, 4294901760
    %v1751 = vsub.f32 %v111, %v1750
    %1752 = vmatpush1.msra.mxu0 %v1751
    %v1753 = vand.u32 %v116, 4294901760
    %v1754 = vsub.f32 %v116, %v1753
    %1755 = vmatprep.subr.mxu0 %v1754
    %v1756 = vand.u32 %v115, 4294901760
    %v1757 = vsub.f32 %v115, %v1756
    %1758 = vmatpush1.msra.mxu0 %v1757
    %v1759 = vand.u32 %v120, 4294901760
    %v1760 = vsub.f32 %v120, %v1759
    %1761 = vmatprep.subr.mxu0 %v1760
    %v1762 = vand.u32 %v119, 4294901760
    %v1763 = vsub.f32 %v119, %v1762
    %1764 = vmatpush1.msra.mxu0 %v1763
    %v1765 = vand.u32 %v124, 4294901760
    %v1766 = vsub.f32 %v124, %v1765
    %1767 = vmatprep.subr.mxu0 %v1766
    %v1768 = vand.u32 %v123, 4294901760
    %v1769 = vsub.f32 %v123, %v1768
    %1770 = vmatpush1.msra.mxu0 %v1769
    %v1771 = vand.u32 %v128, 4294901760
    %v1772 = vsub.f32 %v128, %v1771
    %1773 = vmatprep.subr.mxu0 %v1772
    %v1774 = vand.u32 %v127, 4294901760
    %v1775 = vsub.f32 %v127, %v1774
    %1776 = vmatpush1.msra.mxu0 %v1775
    %v1777 = vand.u32 %v132, 4294901760
    %v1778 = vsub.f32 %v132, %v1777
    %1779 = vmatprep.subr.mxu0 %v1778
    %v1780 = vand.u32 %v131, 4294901760
    %v1781 = vsub.f32 %v131, %v1780
    %1782 = vmatpush1.msra.mxu0 %v1781
    %v1783 = vand.u32 %v136, 4294901760
    %v1784 = vsub.f32 %v136, %v1783
    %1785 = vmatprep.subr.mxu0 %v1784
    %v1786 = vand.u32 %v135, 4294901760
    %v1787 = vsub.f32 %v135, %v1786
    %1788 = vmatpush1.msra.mxu0 %v1787
    %v1789 = vand.u32 %v140, 4294901760
    %v1790 = vsub.f32 %v140, %v1789
    %1791 = vmatprep.subr.mxu0 %v1790
    %v1792 = vand.u32 %v139, 4294901760
    %v1793 = vsub.f32 %v139, %v1792
    %1794 = vmatpush1.msra.mxu0 %v1793
    %v1795 = vand.u32 %v144, 4294901760
    %v1796 = vsub.f32 %v144, %v1795
    %1797 = vmatprep.subr.mxu0 %v1796
    %v1798 = vand.u32 %v143, 4294901760
    %v1799 = vsub.f32 %v143, %v1798
    %1800 = vmatpush1.msra.mxu0 %v1799
    %v1801 = vand.u32 %v148, 4294901760
    %v1802 = vsub.f32 %v148, %v1801
    %1803 = vmatprep.subr.mxu0 %v1802
    %v1804 = vand.u32 %v147, 4294901760
    %v1805 = vsub.f32 %v147, %v1804
    %1806 = vmatpush1.msra.mxu0 %v1805
    %v1807 = vand.u32 %v152, 4294901760
    %v1808 = vsub.f32 %v152, %v1807
    %1809 = vmatprep.subr.mxu0 %v1808
    %v1810 = vand.u32 %v151, 4294901760
    %v1811 = vsub.f32 %v151, %v1810
    %1812 = vmatpush1.msra.mxu0 %v1811
    %v1813 = vand.u32 %v156, 4294901760
    %v1814 = vsub.f32 %v156, %v1813
    %1815 = vmatprep.subr.mxu0 %v1814
    %v1816 = vand.u32 %v155, 4294901760
    %v1817 = vsub.f32 %v155, %v1816
    %1818 = vmatpush1.msra.mxu0 %v1817
    %v1819 = vand.u32 %v160, 4294901760
    %v1820 = vsub.f32 %v160, %v1819
    %1821 = vmatprep.subr.mxu0 %v1820
    %v1822 = vand.u32 %v159, 4294901760
    %v1823 = vsub.f32 %v159, %v1822
    %1824 = vmatpush1.msra.mxu0 %v1823
    %v1825 = vand.u32 %v164, 4294901760
    %v1826 = vsub.f32 %v164, %v1825
    %1827 = vmatprep.subr.mxu0 %v1826
    %v1828 = vand.u32 %v163, 4294901760
    %v1829 = vsub.f32 %v163, %v1828
    %1830 = vmatpush1.msra.mxu0 %v1829
    %1831 = vmatprep.subr.mxu0 0.0
    %1832 = vmatpush1.msra.mxu0 0.0
    %1833 = vmatprep.subr.mxu0 0.0
    %1834 = vmatpush1.msra.mxu0 0.0
    %1835 = vmatprep.subr.mxu0 0.0
    %1836 = vmatpush1.msra.mxu0 0.0
    %1837 = vmatprep.subr.mxu0 0.0
    %1838 = vmatpush1.msra.mxu0 0.0
    %1839 = vmatprep.subr.mxu0 0.0
    %1840 = vmatpush1.msra.mxu0 0.0
    %1841 = vmatprep.subr.mxu0 0.0
    %1842 = vmatpush1.msra.mxu0 0.0
    %1843 = vmatprep.subr.mxu0 0.0
    %1844 = vmatpush1.msra.mxu0 0.0
    %1845 = vmatprep.subr.mxu0 0.0
    %1846 = vmatpush1.msra.mxu0 0.0
    %v1847 = vand.u32 %v167, 4294901760
    %v1848 = vsub.f32 %v167, %v1847
    %1849 = vmatprep.mubr.f32.mxu0 %v1848
    %v1850 = vand.u32 %v67, 4294901760
    %v1851 = vsub.f32 %v67, %v1850
    %1852 = vmatmul.mubr.f32.gmra.mrb[0].mxu0 %v1851
    %v1853 = vpop.f32.mrb[0].mxu0
    %v1854 = vadd.f32 %v1683, %v1853
    %v1855 = vpop.f32.mrb[0].mxu0
    %v1856 = vadd.f32 %v1685, %v1855
    %1857 = vdwg.mxu0
    %v1858 = vand.u32 %v72, 4294901760
    %1859 = vmatprep.subr.mxu0 %v1858
    %v1860 = vand.u32 %v71, 4294901760
    %1861 = vmatpush1.msra.mxu0 %v1860
    %v1862 = vand.u32 %v76, 4294901760
    %1863 = vmatprep.subr.mxu0 %v1862
    %v1864 = vand.u32 %v75, 4294901760
    %1865 = vmatpush1.msra.mxu0 %v1864
    %v1866 = vand.u32 %v80, 4294901760
    %1867 = vmatprep.subr.mxu0 %v1866
    %v1868 = vand.u32 %v79, 4294901760
    %1869 = vmatpush1.msra.mxu0 %v1868
    %v1870 = vand.u32 %v84, 4294901760
    %1871 = vmatprep.subr.mxu0 %v1870
    %v1872 = vand.u32 %v83, 4294901760
    %1873 = vmatpush1.msra.mxu0 %v1872
    %v1874 = vand.u32 %v88, 4294901760
    %1875 = vmatprep.subr.mxu0 %v1874
    %v1876 = vand.u32 %v87, 4294901760
    %1877 = vmatpush1.msra.mxu0 %v1876
    %v1878 = vand.u32 %v92, 4294901760
    %1879 = vmatprep.subr.mxu0 %v1878
    %v1880 = vand.u32 %v91, 4294901760
    %1881 = vmatpush1.msra.mxu0 %v1880
    %v1882 = vand.u32 %v96, 4294901760
    %1883 = vmatprep.subr.mxu0 %v1882
    %v1884 = vand.u32 %v95, 4294901760
    %1885 = vmatpush1.msra.mxu0 %v1884
    %v1886 = vand.u32 %v100, 4294901760
    %1887 = vmatprep.subr.mxu0 %v1886
    %v1888 = vand.u32 %v99, 4294901760
    %1889 = vmatpush1.msra.mxu0 %v1888
    %v1890 = vand.u32 %v104, 4294901760
    %1891 = vmatprep.subr.mxu0 %v1890
    %v1892 = vand.u32 %v103, 4294901760
    %1893 = vmatpush1.msra.mxu0 %v1892
    %v1894 = vand.u32 %v108, 4294901760
    %1895 = vmatprep.subr.mxu0 %v1894
    %v1896 = vand.u32 %v107, 4294901760
    %1897 = vmatpush1.msra.mxu0 %v1896
    %v1898 = vand.u32 %v112, 4294901760
    %1899 = vmatprep.subr.mxu0 %v1898
    %v1900 = vand.u32 %v111, 4294901760
    %1901 = vmatpush1.msra.mxu0 %v1900
    %v1902 = vand.u32 %v116, 4294901760
    %1903 = vmatprep.subr.mxu0 %v1902
    %v1904 = vand.u32 %v115, 4294901760
    %1905 = vmatpush1.msra.mxu0 %v1904
    %v1906 = vand.u32 %v120, 4294901760
    %1907 = vmatprep.subr.mxu0 %v1906
    %v1908 = vand.u32 %v119, 4294901760
    %1909 = vmatpush1.msra.mxu0 %v1908
    %v1910 = vand.u32 %v124, 4294901760
    %1911 = vmatprep.subr.mxu0 %v1910
    %v1912 = vand.u32 %v123, 4294901760
    %1913 = vmatpush1.msra.mxu0 %v1912
    %v1914 = vand.u32 %v128, 4294901760
    %1915 = vmatprep.subr.mxu0 %v1914
    %v1916 = vand.u32 %v127, 4294901760
    %1917 = vmatpush1.msra.mxu0 %v1916
    %v1918 = vand.u32 %v132, 4294901760
    %1919 = vmatprep.subr.mxu0 %v1918
    %v1920 = vand.u32 %v131, 4294901760
    %1921 = vmatpush1.msra.mxu0 %v1920
    %v1922 = vand.u32 %v136, 4294901760
    %1923 = vmatprep.subr.mxu0 %v1922
    %v1924 = vand.u32 %v135, 4294901760
    %1925 = vmatpush1.msra.mxu0 %v1924
    %v1926 = vand.u32 %v140, 4294901760
    %1927 = vmatprep.subr.mxu0 %v1926
    %v1928 = vand.u32 %v139, 4294901760
    %1929 = vmatpush1.msra.mxu0 %v1928
    %v1930 = vand.u32 %v144, 4294901760
    %1931 = vmatprep.subr.mxu0 %v1930
    %v1932 = vand.u32 %v143, 4294901760
    %1933 = vmatpush1.msra.mxu0 %v1932
    %v1934 = vand.u32 %v148, 4294901760
    %1935 = vmatprep.subr.mxu0 %v1934
    %v1936 = vand.u32 %v147, 4294901760
    %1937 = vmatpush1.msra.mxu0 %v1936
    %v1938 = vand.u32 %v152, 4294901760
    %1939 = vmatprep.subr.mxu0 %v1938
    %v1940 = vand.u32 %v151, 4294901760
    %1941 = vmatpush1.msra.mxu0 %v1940
    %v1942 = vand.u32 %v156, 4294901760
    %1943 = vmatprep.subr.mxu0 %v1942
    %v1944 = vand.u32 %v155, 4294901760
    %1945 = vmatpush1.msra.mxu0 %v1944
    %v1946 = vand.u32 %v160, 4294901760
    %1947 = vmatprep.subr.mxu0 %v1946
    %v1948 = vand.u32 %v159, 4294901760
    %1949 = vmatpush1.msra.mxu0 %v1948
    %v1950 = vand.u32 %v164, 4294901760
    %1951 = vmatprep.subr.mxu0 %v1950
    %v1952 = vand.u32 %v163, 4294901760
    %1953 = vmatpush1.msra.mxu0 %v1952
    %1954 = vmatprep.subr.mxu0 0.0
    %1955 = vmatpush1.msra.mxu0 0.0
    %1956 = vmatprep.subr.mxu0 0.0
    %1957 = vmatpush1.msra.mxu0 0.0
    %1958 = vmatprep.subr.mxu0 0.0
    %1959 = vmatpush1.msra.mxu0 0.0
    %1960 = vmatprep.subr.mxu0 0.0
    %1961 = vmatpush1.msra.mxu0 0.0
    %1962 = vmatprep.subr.mxu0 0.0
    %1963 = vmatpush1.msra.mxu0 0.0
    %1964 = vmatprep.subr.mxu0 0.0
    %1965 = vmatpush1.msra.mxu0 0.0
    %1966 = vmatprep.subr.mxu0 0.0
    %1967 = vmatpush1.msra.mxu0 0.0
    %1968 = vmatprep.subr.mxu0 0.0
    %1969 = vmatpush1.msra.mxu0 0.0
    %v1970 = vand.u32 %v167, 4294901760
    %v1971 = vsub.f32 %v167, %v1970
    %v1972 = vand.u32 %v1971, 4294901760
    %1973 = vmatprep.mubr.f32.mxu0 %v1972
    %v1974 = vand.u32 %v67, 4294901760
    %v1975 = vsub.f32 %v67, %v1974
    %v1976 = vand.u32 %v1975, 4294901760
    %1977 = vmatmul.mubr.f32.gmra.mrb[0].mxu0 %v1976
    %v1978 = vpop.f32.mrb[0].mxu0
    %v1979 = vadd.f32 %v1854, %v1978
    %v1980 = vpop.f32.mrb[0].mxu0
    %v1981 = vadd.f32 %v1856, %v1980
    %1982 = vdwg.mxu0
    %v1983 = vand.u32 %v72, 4294901760
    %v1984 = vsub.f32 %v72, %v1983
    %v1985 = vand.u32 %v1984, 4294901760
    %1986 = vmatprep.subr.mxu0 %v1985
    %v1987 = vand.u32 %v71, 4294901760
    %v1988 = vsub.f32 %v71, %v1987
    %v1989 = vand.u32 %v1988, 4294901760
    %1990 = vmatpush1.msra.mxu0 %v1989
    %v1991 = vand.u32 %v76, 4294901760
    %v1992 = vsub.f32 %v76, %v1991
    %v1993 = vand.u32 %v1992, 4294901760
    %1994 = vmatprep.subr.mxu0 %v1993
    %v1995 = vand.u32 %v75, 4294901760
    %v1996 = vsub.f32 %v75, %v1995
    %v1997 = vand.u32 %v1996, 4294901760
    %1998 = vmatpush1.msra.mxu0 %v1997
    %v1999 = vand.u32 %v80, 4294901760
    %v2000 = vsub.f32 %v80, %v1999
    %v2001 = vand.u32 %v2000, 4294901760
    %2002 = vmatprep.subr.mxu0 %v2001
    %v2003 = vand.u32 %v79, 4294901760
    %v2004 = vsub.f32 %v79, %v2003
    %v2005 = vand.u32 %v2004, 4294901760
    %2006 = vmatpush1.msra.mxu0 %v2005
    %v2007 = vand.u32 %v84, 4294901760
    %v2008 = vsub.f32 %v84, %v2007
    %v2009 = vand.u32 %v2008, 4294901760
    %2010 = vmatprep.subr.mxu0 %v2009
    %v2011 = vand.u32 %v83, 4294901760
    %v2012 = vsub.f32 %v83, %v2011
    %v2013 = vand.u32 %v2012, 4294901760
    %2014 = vmatpush1.msra.mxu0 %v2013
    %v2015 = vand.u32 %v88, 4294901760
    %v2016 = vsub.f32 %v88, %v2015
    %v2017 = vand.u32 %v2016, 4294901760
    %2018 = vmatprep.subr.mxu0 %v2017
    %v2019 = vand.u32 %v87, 4294901760
    %v2020 = vsub.f32 %v87, %v2019
    %v2021 = vand.u32 %v2020, 4294901760
    %2022 = vmatpush1.msra.mxu0 %v2021
    %v2023 = vand.u32 %v92, 4294901760
    %v2024 = vsub.f32 %v92, %v2023
    %v2025 = vand.u32 %v2024, 4294901760
    %2026 = vmatprep.subr.mxu0 %v2025
    %v2027 = vand.u32 %v91, 4294901760
    %v2028 = vsub.f32 %v91, %v2027
    %v2029 = vand.u32 %v2028, 4294901760
    %2030 = vmatpush1.msra.mxu0 %v2029
    %v2031 = vand.u32 %v96, 4294901760
    %v2032 = vsub.f32 %v96, %v2031
    %v2033 = vand.u32 %v2032, 4294901760
    %2034 = vmatprep.subr.mxu0 %v2033
    %v2035 = vand.u32 %v95, 4294901760
    %v2036 = vsub.f32 %v95, %v2035
    %v2037 = vand.u32 %v2036, 4294901760
    %2038 = vmatpush1.msra.mxu0 %v2037
    %v2039 = vand.u32 %v100, 4294901760
    %v2040 = vsub.f32 %v100, %v2039
    %v2041 = vand.u32 %v2040, 4294901760
    %2042 = vmatprep.subr.mxu0 %v2041
    %v2043 = vand.u32 %v99, 4294901760
    %v2044 = vsub.f32 %v99, %v2043
    %v2045 = vand.u32 %v2044, 4294901760
    %2046 = vmatpush1.msra.mxu0 %v2045
    %v2047 = vand.u32 %v104, 4294901760
    %v2048 = vsub.f32 %v104, %v2047
    %v2049 = vand.u32 %v2048, 4294901760
    %2050 = vmatprep.subr.mxu0 %v2049
    %v2051 = vand.u32 %v103, 4294901760
    %v2052 = vsub.f32 %v103, %v2051
    %v2053 = vand.u32 %v2052, 4294901760
    %2054 = vmatpush1.msra.mxu0 %v2053
    %v2055 = vand.u32 %v108, 4294901760
    %v2056 = vsub.f32 %v108, %v2055
    %v2057 = vand.u32 %v2056, 4294901760
    %2058 = vmatprep.subr.mxu0 %v2057
    %v2059 = vand.u32 %v107, 4294901760
    %v2060 = vsub.f32 %v107, %v2059
    %v2061 = vand.u32 %v2060, 4294901760
    %2062 = vmatpush1.msra.mxu0 %v2061
    %v2063 = vand.u32 %v112, 4294901760
    %v2064 = vsub.f32 %v112, %v2063
    %v2065 = vand.u32 %v2064, 4294901760
    %2066 = vmatprep.subr.mxu0 %v2065
    %v2067 = vand.u32 %v111, 4294901760
    %v2068 = vsub.f32 %v111, %v2067
    %v2069 = vand.u32 %v2068, 4294901760
    %2070 = vmatpush1.msra.mxu0 %v2069
    %v2071 = vand.u32 %v116, 4294901760
    %v2072 = vsub.f32 %v116, %v2071
    %v2073 = vand.u32 %v2072, 4294901760
    %2074 = vmatprep.subr.mxu0 %v2073
    %v2075 = vand.u32 %v115, 4294901760
    %v2076 = vsub.f32 %v115, %v2075
    %v2077 = vand.u32 %v2076, 4294901760
    %2078 = vmatpush1.msra.mxu0 %v2077
    %v2079 = vand.u32 %v120, 4294901760
    %v2080 = vsub.f32 %v120, %v2079
    %v2081 = vand.u32 %v2080, 4294901760
    %2082 = vmatprep.subr.mxu0 %v2081
    %v2083 = vand.u32 %v119, 4294901760
    %v2084 = vsub.f32 %v119, %v2083
    %v2085 = vand.u32 %v2084, 4294901760
    %2086 = vmatpush1.msra.mxu0 %v2085
    %v2087 = vand.u32 %v124, 4294901760
    %v2088 = vsub.f32 %v124, %v2087
    %v2089 = vand.u32 %v2088, 4294901760
    %2090 = vmatprep.subr.mxu0 %v2089
    %v2091 = vand.u32 %v123, 4294901760
    %v2092 = vsub.f32 %v123, %v2091
    %v2093 = vand.u32 %v2092, 4294901760
    %2094 = vmatpush1.msra.mxu0 %v2093
    %v2095 = vand.u32 %v128, 4294901760
    %v2096 = vsub.f32 %v128, %v2095
    %v2097 = vand.u32 %v2096, 4294901760
    %2098 = vmatprep.subr.mxu0 %v2097
    %v2099 = vand.u32 %v127, 4294901760
    %v2100 = vsub.f32 %v127, %v2099
    %v2101 = vand.u32 %v2100, 4294901760
    %2102 = vmatpush1.msra.mxu0 %v2101
    %v2103 = vand.u32 %v132, 4294901760
    %v2104 = vsub.f32 %v132, %v2103
    %v2105 = vand.u32 %v2104, 4294901760
    %2106 = vmatprep.subr.mxu0 %v2105
    %v2107 = vand.u32 %v131, 4294901760
    %v2108 = vsub.f32 %v131, %v2107
    %v2109 = vand.u32 %v2108, 4294901760
    %2110 = vmatpush1.msra.mxu0 %v2109
    %v2111 = vand.u32 %v136, 4294901760
    %v2112 = vsub.f32 %v136, %v2111
    %v2113 = vand.u32 %v2112, 4294901760
    %2114 = vmatprep.subr.mxu0 %v2113
    %v2115 = vand.u32 %v135, 4294901760
    %v2116 = vsub.f32 %v135, %v2115
    %v2117 = vand.u32 %v2116, 4294901760
    %2118 = vmatpush1.msra.mxu0 %v2117
    %v2119 = vand.u32 %v140, 4294901760
    %v2120 = vsub.f32 %v140, %v2119
    %v2121 = vand.u32 %v2120, 4294901760
    %2122 = vmatprep.subr.mxu0 %v2121
    %v2123 = vand.u32 %v139, 4294901760
    %v2124 = vsub.f32 %v139, %v2123
    %v2125 = vand.u32 %v2124, 4294901760
    %2126 = vmatpush1.msra.mxu0 %v2125
    %v2127 = vand.u32 %v144, 4294901760
    %v2128 = vsub.f32 %v144, %v2127
    %v2129 = vand.u32 %v2128, 4294901760
    %2130 = vmatprep.subr.mxu0 %v2129
    %v2131 = vand.u32 %v143, 4294901760
    %v2132 = vsub.f32 %v143, %v2131
    %v2133 = vand.u32 %v2132, 4294901760
    %2134 = vmatpush1.msra.mxu0 %v2133
    %v2135 = vand.u32 %v148, 4294901760
    %v2136 = vsub.f32 %v148, %v2135
    %v2137 = vand.u32 %v2136, 4294901760
    %2138 = vmatprep.subr.mxu0 %v2137
    %v2139 = vand.u32 %v147, 4294901760
    %v2140 = vsub.f32 %v147, %v2139
    %v2141 = vand.u32 %v2140, 4294901760
    %2142 = vmatpush1.msra.mxu0 %v2141
    %v2143 = vand.u32 %v152, 4294901760
    %v2144 = vsub.f32 %v152, %v2143
    %v2145 = vand.u32 %v2144, 4294901760
    %2146 = vmatprep.subr.mxu0 %v2145
    %v2147 = vand.u32 %v151, 4294901760
    %v2148 = vsub.f32 %v151, %v2147
    %v2149 = vand.u32 %v2148, 4294901760
    %2150 = vmatpush1.msra.mxu0 %v2149
    %v2151 = vand.u32 %v156, 4294901760
    %v2152 = vsub.f32 %v156, %v2151
    %v2153 = vand.u32 %v2152, 4294901760
    %2154 = vmatprep.subr.mxu0 %v2153
    %v2155 = vand.u32 %v155, 4294901760
    %v2156 = vsub.f32 %v155, %v2155
    %v2157 = vand.u32 %v2156, 4294901760
    %2158 = vmatpush1.msra.mxu0 %v2157
    %v2159 = vand.u32 %v160, 4294901760
    %v2160 = vsub.f32 %v160, %v2159
    %v2161 = vand.u32 %v2160, 4294901760
    %2162 = vmatprep.subr.mxu0 %v2161
    %v2163 = vand.u32 %v159, 4294901760
    %v2164 = vsub.f32 %v159, %v2163
    %v2165 = vand.u32 %v2164, 4294901760
    %2166 = vmatpush1.msra.mxu0 %v2165
    %v2167 = vand.u32 %v164, 4294901760
    %v2168 = vsub.f32 %v164, %v2167
    %v2169 = vand.u32 %v2168, 4294901760
    %2170 = vmatprep.subr.mxu0 %v2169
    %v2171 = vand.u32 %v163, 4294901760
    %v2172 = vsub.f32 %v163, %v2171
    %v2173 = vand.u32 %v2172, 4294901760
    %2174 = vmatpush1.msra.mxu0 %v2173
    %2175 = vmatprep.subr.mxu0 0.0
    %2176 = vmatpush1.msra.mxu0 0.0
    %2177 = vmatprep.subr.mxu0 0.0
    %2178 = vmatpush1.msra.mxu0 0.0
    %2179 = vmatprep.subr.mxu0 0.0
    %2180 = vmatpush1.msra.mxu0 0.0
    %2181 = vmatprep.subr.mxu0 0.0
    %2182 = vmatpush1.msra.mxu0 0.0
    %2183 = vmatprep.subr.mxu0 0.0
    %2184 = vmatpush1.msra.mxu0 0.0
    %2185 = vmatprep.subr.mxu0 0.0
    %2186 = vmatpush1.msra.mxu0 0.0
    %2187 = vmatprep.subr.mxu0 0.0
    %2188 = vmatpush1.msra.mxu0 0.0
    %2189 = vmatprep.subr.mxu0 0.0
    %2190 = vmatpush1.msra.mxu0 0.0
    %v2191 = vand.u32 %v167, 4294901760
    %2192 = vmatprep.mubr.f32.mxu0 %v2191
    %v2193 = vand.u32 %v67, 4294901760
    %2194 = vmatmul.mubr.f32.gmra.mrb[0].mxu0 %v2193
    %v2195 = vpop.f32.mrb[0].mxu0
    %v2196 = vadd.f32 %v1979, %v2195
    %v2197 = vpop.f32.mrb[0].mxu0
    %v2198 = vadd.f32 %v1981, %v2197
    %2199 = vdwg.mxu0
    %v2200 = vand.u32 %v72, 4294901760
    %2201 = vmatprep.subr.mxu0 %v2200
    %v2202 = vand.u32 %v71, 4294901760
    %2203 = vmatpush1.msra.mxu0 %v2202
    %v2204 = vand.u32 %v76, 4294901760
    %2205 = vmatprep.subr.mxu0 %v2204
    %v2206 = vand.u32 %v75, 4294901760
    %2207 = vmatpush1.msra.mxu0 %v2206
    %v2208 = vand.u32 %v80, 4294901760
    %2209 = vmatprep.subr.mxu0 %v2208
    %v2210 = vand.u32 %v79, 4294901760
    %2211 = vmatpush1.msra.mxu0 %v2210
    %v2212 = vand.u32 %v84, 4294901760
    %2213 = vmatprep.subr.mxu0 %v2212
    %v2214 = vand.u32 %v83, 4294901760
    %2215 = vmatpush1.msra.mxu0 %v2214
    %v2216 = vand.u32 %v88, 4294901760
    %2217 = vmatprep.subr.mxu0 %v2216
    %v2218 = vand.u32 %v87, 4294901760
    %2219 = vmatpush1.msra.mxu0 %v2218
    %v2220 = vand.u32 %v92, 4294901760
    %2221 = vmatprep.subr.mxu0 %v2220
    %v2222 = vand.u32 %v91, 4294901760
    %2223 = vmatpush1.msra.mxu0 %v2222
    %v2224 = vand.u32 %v96, 4294901760
    %2225 = vmatprep.subr.mxu0 %v2224
    %v2226 = vand.u32 %v95, 4294901760
    %2227 = vmatpush1.msra.mxu0 %v2226
    %v2228 = vand.u32 %v100, 4294901760
    %2229 = vmatprep.subr.mxu0 %v2228
    %v2230 = vand.u32 %v99, 4294901760
    %2231 = vmatpush1.msra.mxu0 %v2230
    %v2232 = vand.u32 %v104, 4294901760
    %2233 = vmatprep.subr.mxu0 %v2232
    %v2234 = vand.u32 %v103, 4294901760
    %2235 = vmatpush1.msra.mxu0 %v2234
    %v2236 = vand.u32 %v108, 4294901760
    %2237 = vmatprep.subr.mxu0 %v2236
    %v2238 = vand.u32 %v107, 4294901760
    %2239 = vmatpush1.msra.mxu0 %v2238
    %v2240 = vand.u32 %v112, 4294901760
    %2241 = vmatprep.subr.mxu0 %v2240
    %v2242 = vand.u32 %v111, 4294901760
    %2243 = vmatpush1.msra.mxu0 %v2242
    %v2244 = vand.u32 %v116, 4294901760
    %2245 = vmatprep.subr.mxu0 %v2244
    %v2246 = vand.u32 %v115, 4294901760
    %2247 = vmatpush1.msra.mxu0 %v2246
    %v2248 = vand.u32 %v120, 4294901760
    %2249 = vmatprep.subr.mxu0 %v2248
    %v2250 = vand.u32 %v119, 4294901760
    %2251 = vmatpush1.msra.mxu0 %v2250
    %v2252 = vand.u32 %v124, 4294901760
    %2253 = vmatprep.subr.mxu0 %v2252
    %v2254 = vand.u32 %v123, 4294901760
    %2255 = vmatpush1.msra.mxu0 %v2254
    %v2256 = vand.u32 %v128, 4294901760
    %2257 = vmatprep.subr.mxu0 %v2256
    %v2258 = vand.u32 %v127, 4294901760
    %2259 = vmatpush1.msra.mxu0 %v2258
    %v2260 = vand.u32 %v132, 4294901760
    %2261 = vmatprep.subr.mxu0 %v2260
    %v2262 = vand.u32 %v131, 4294901760
    %2263 = vmatpush1.msra.mxu0 %v2262
    %v2264 = vand.u32 %v136, 4294901760
    %2265 = vmatprep.subr.mxu0 %v2264
    %v2266 = vand.u32 %v135, 4294901760
    %2267 = vmatpush1.msra.mxu0 %v2266
    %v2268 = vand.u32 %v140, 4294901760
    %2269 = vmatprep.subr.mxu0 %v2268
    %v2270 = vand.u32 %v139, 4294901760
    %2271 = vmatpush1.msra.mxu0 %v2270
    %v2272 = vand.u32 %v144, 4294901760
    %2273 = vmatprep.subr.mxu0 %v2272
    %v2274 = vand.u32 %v143, 4294901760
    %2275 = vmatpush1.msra.mxu0 %v2274
    %v2276 = vand.u32 %v148, 4294901760
    %2277 = vmatprep.subr.mxu0 %v2276
    %v2278 = vand.u32 %v147, 4294901760
    %2279 = vmatpush1.msra.mxu0 %v2278
    %v2280 = vand.u32 %v152, 4294901760
    %2281 = vmatprep.subr.mxu0 %v2280
    %v2282 = vand.u32 %v151, 4294901760
    %2283 = vmatpush1.msra.mxu0 %v2282
    %v2284 = vand.u32 %v156, 4294901760
    %2285 = vmatprep.subr.mxu0 %v2284
    %v2286 = vand.u32 %v155, 4294901760
    %2287 = vmatpush1.msra.mxu0 %v2286
    %v2288 = vand.u32 %v160, 4294901760
    %2289 = vmatprep.subr.mxu0 %v2288
    %v2290 = vand.u32 %v159, 4294901760
    %2291 = vmatpush1.msra.mxu0 %v2290
    %v2292 = vand.u32 %v164, 4294901760
    %2293 = vmatprep.subr.mxu0 %v2292
    %v2294 = vand.u32 %v163, 4294901760
    %2295 = vmatpush1.msra.mxu0 %v2294
    %2296 = vmatprep.subr.mxu0 0.0
    %2297 = vmatpush1.msra.mxu0 0.0
    %2298 = vmatprep.subr.mxu0 0.0
    %2299 = vmatpush1.msra.mxu0 0.0
    %2300 = vmatprep.subr.mxu0 0.0
    %2301 = vmatpush1.msra.mxu0 0.0
    %2302 = vmatprep.subr.mxu0 0.0
    %2303 = vmatpush1.msra.mxu0 0.0
    %2304 = vmatprep.subr.mxu0 0.0
    %2305 = vmatpush1.msra.mxu0 0.0
    %2306 = vmatprep.subr.mxu0 0.0
    %2307 = vmatpush1.msra.mxu0 0.0
    %2308 = vmatprep.subr.mxu0 0.0
    %2309 = vmatpush1.msra.mxu0 0.0
    %2310 = vmatprep.subr.mxu0 0.0
    %2311 = vmatpush1.msra.mxu0 0.0
    %v2312 = vand.u32 %v167, 4294901760
    %2313 = vmatprep.mubr.f32.mxu0 %v2312
    %v2314 = vand.u32 %v67, 4294901760
    %2315 = vmatmul.mubr.f32.gmra.mrb[0].mxu0 %v2314
    %v2316 = vpop.f32.mrb[0].mxu0
    %v2317 = vadd.f32 %v2196, %v2316
    %v2318 = vpop.f32.mrb[0].mxu0
    %v2319 = vadd.f32 %v2198, %v2318
    %2320 = vdwg.mxu0
    %2321 = vadd.xlane.f32.xlu0 %v1241
    %v2322 = vpop.xlane.xlu0 %2321
    %v2323 = vrcp.pop 128.0
    %v2324 = vmul.f32 %v2322, %v2323
    %v2325 = vsub.f32 %v1241, %v2324
    %v2326 = vmul.f32 %v2325, %v2325
    %2327 = vadd.xlane.f32.xlu0 %v2326
    %v2328 = vpop.xlane.xlu0 %2327
    %v2329 = vmul.f32 %v2328, %v2323
    %v2330 = vadd.f32 %v2329, 1e-05
    %v2331 = vrsqrt.pop %v2330
    %v2332 = vmul.f32 %v2325, %v2331
    %v2333 = vld [vmem:[%s3] sm:$0x1]
    %v2335 = vlaneseq
    %v2336 = vshrl.u32 %v2335, 7
    %v2337 = vsub.s32 0, %v2336
    %v2338 = vrot.slane %v2333, %v2337
    %v2340 = vmul.f32 %v2332, %v2338
    %v2341 = vld [vmem:[%s4] sm:$0x1]
    %v2343 = vlaneseq
    %v2344 = vshrl.u32 %v2343, 7
    %v2345 = vsub.s32 0, %v2344
    %v2346 = vrot.slane %v2341, %v2345
    %v2348 = vadd.f32 %v2340, %v2346
    %2349 = vadd.xlane.f32.xlu0 %v1243
    %v2350 = vpop.xlane.xlu0 %2349
    %v2351 = vmul.f32 %v2350, %v2323
    %v2352 = vsub.f32 %v1243, %v2351
    %v2353 = vmul.f32 %v2352, %v2352
    %2354 = vadd.xlane.f32.xlu0 %v2353
    %v2355 = vpop.xlane.xlu0 %2354
    %v2356 = vmul.f32 %v2355, %v2323
    %v2357 = vadd.f32 %v2356, 1e-05
    %v2358 = vrsqrt.pop %v2357
    %v2359 = vmul.f32 %v2352, %v2358
    %v2360 = vld [vmem:[%s3 + $0x1] sm:$0x1]
    %v2362 = vlaneseq
    %v2363 = vshrl.u32 %v2362, 7
    %v2364 = vsub.s32 0, %v2363
    %v2365 = vrot.slane %v2360, %v2364
    %v2367 = vmul.f32 %v2359, %v2365
    %v2368 = vld [vmem:[%s4 + $0x1] sm:$0x1]
    %v2370 = vlaneseq
    %v2371 = vshrl.u32 %v2370, 7
    %v2372 = vsub.s32 0, %v2371
    %v2373 = vrot.slane %v2368, %v2372
    %v2375 = vadd.f32 %v2367, %v2373
    %2376 = vadd.xlane.f32.xlu0 %v2317
    %v2377 = vpop.xlane.xlu0 %2376
    %v2378 = vmul.f32 %v2377, %v2323
    %v2379 = vsub.f32 %v2317, %v2378
    %v2380 = vmul.f32 %v2379, %v2379
    %2381 = vadd.xlane.f32.xlu0 %v2380
    %v2382 = vpop.xlane.xlu0 %2381
    %v2383 = vmul.f32 %v2382, %v2323
    %v2384 = vadd.f32 %v2383, 1e-05
    %v2385 = vrsqrt.pop %v2384
    %v2386 = vmul.f32 %v2379, %v2385
    %v2387 = vld [vmem:[%s3 + $0x2] sm:$0x1]
    %v2389 = vlaneseq
    %v2390 = vshrl.u32 %v2389, 7
    %v2391 = vsub.s32 0, %v2390
    %v2392 = vrot.slane %v2387, %v2391
    %v2394 = vmul.f32 %v2386, %v2392
    %v2395 = vld [vmem:[%s4 + $0x2] sm:$0x1]
    %v2397 = vlaneseq
    %v2398 = vshrl.u32 %v2397, 7
    %v2399 = vsub.s32 0, %v2398
    %v2400 = vrot.slane %v2395, %v2399
    %v2402 = vadd.f32 %v2394, %v2400
    %2403 = vadd.xlane.f32.xlu0 %v2319
    %v2404 = vpop.xlane.xlu0 %2403
    %v2405 = vmul.f32 %v2404, %v2323
    %v2406 = vsub.f32 %v2319, %v2405
    %v2407 = vmul.f32 %v2406, %v2406
    %2408 = vadd.xlane.f32.xlu0 %v2407
    %v2409 = vpop.xlane.xlu0 %2408
    %v2410 = vmul.f32 %v2409, %v2323
    %v2411 = vadd.f32 %v2410, 1e-05
    %v2412 = vrsqrt.pop %v2411
    %v2413 = vmul.f32 %v2406, %v2412
    %v2414 = vld [vmem:[%s3 + $0x3] sm:$0x1]
    %v2416 = vlaneseq
    %v2417 = vshrl.u32 %v2416, 7
    %v2418 = vsub.s32 0, %v2417
    %v2419 = vrot.slane %v2414, %v2418
    %v2421 = vmul.f32 %v2413, %v2419
    %v2422 = vld [vmem:[%s4 + $0x3] sm:$0x1]
    %v2424 = vlaneseq
    %v2425 = vshrl.u32 %v2424, 7
    %v2426 = vsub.s32 0, %v2425
    %v2427 = vrot.slane %v2422, %v2426
    %v2429 = vadd.f32 %v2421, %v2427
    %v2430 = vsub.f32 0.0, %v2348
    %v2431 = vmul.f32 %v2430, 1.442695
    %v2432 = vpow.pop %v2431
    %v2433 = vadd.f32 %v2432, 1.0
    %v2434 = vrcp.pop %v2433
    %v2435 = vmul.f32 1.0, %v2434
    %v2436 = vadd.f32 %v2375, 1.0
    %v2437 = vsub.f32 0.0, %v2436
    %v2438 = vmul.f32 %v2437, 1.442695
    %v2439 = vpow.pop %v2438
    %v2440 = vadd.f32 %v2439, 1.0
    %v2441 = vrcp.pop %v2440
    %v2442 = vmul.f32 1.0, %v2441
    %v2443 = vsub.f32 0.0, %v2402
    %v2444 = vmul.f32 %v2443, 1.442695
    %v2445 = vpow.pop %v2444
    %v2446 = vadd.f32 %v2445, 1.0
    %v2447 = vrcp.pop %v2446
    %v2448 = vmul.f32 1.0, %v2447
    %v2449 = vtanh.pop %v2429
    %v2450 = vld [vmem:[#allocation5] sm:$0xff]
    %v2451 = vmul.f32 %v2442, %v2450
    %v2452 = vmul.f32 %v2435, %v2449
    %v2453 = vadd.f32 %v2451, %v2452
    %2454 = vadd.xlane.f32.xlu0 %v2453
    %v2455 = vpop.xlane.xlu0 %2454
    %v2456 = vmul.f32 %v2455, %v2323
    %v2457 = vsub.f32 %v2453, %v2456
    %v2458 = vmul.f32 %v2457, %v2457
    %2459 = vadd.xlane.f32.xlu0 %v2458
    %v2460 = vpop.xlane.xlu0 %2459
    %v2461 = vmul.f32 %v2460, %v2323
    %v2462 = vadd.f32 %v2461, 1e-05
    %v2463 = vrsqrt.pop %v2462
    %v2464 = vmul.f32 %v2457, %v2463
    %v2465 = vld [vmem:[%s5] sm:$0x1]
    %v2467 = vlaneseq
    %v2468 = vshrl.u32 %v2467, 7
    %v2469 = vsub.s32 0, %v2468
    %v2470 = vrot.slane %v2465, %v2469
    %v2472 = vmul.f32 %v2464, %v2470
    %v2473 = vld [vmem:[%s6] sm:$0x1]
    %v2475 = vlaneseq
    %v2476 = vshrl.u32 %v2475, 7
    %v2477 = vsub.s32 0, %v2476
    %v2478 = vrot.slane %v2473, %v2477
    %v2480 = vadd.f32 %v2472, %v2478
    %v2481 = vtanh.pop %v2480
    %v2482 = vmul.f32 %v2448, %v2481
    %2483 = vst [vmem:[#allocation8] sm:$0xff] %v2482
    %2484 = vst [vmem:[#allocation9] sm:$0xff] %v2453
    // Predicated region
    $region42: #{tpu_custom_call.1} parent=1 // pred_check
      _
    $region43: #{tpu_custom_call.1} parent=1 // pred_check_branch
      %2486 = sbr.rel (0) target = $region45
    $region44: #{tpu_custom_call.1} parent=1 // pred_region
      %s2488 = ssub.s32 128, 128
      %2489 = vsyncadd [#allocation4], %s2488
      %s2491 = sshll.u32 [#allocation8], 4
      %s2492 = int_to_ptr.vmem [resolvable:$true] %s2491
      %2494 = dma.vmem_to_hbm [thread:$0]  %s2492, 128, %s7, [#allocation4]
    $region45: #{tpu_custom_call.1} parent=1 // pred_fallthru
      _
    // Predicated region
    $region46: #{tpu_custom_call.1} parent=1 // pred_check
      _
    $region47: #{tpu_custom_call.1} parent=1 // pred_check_branch
      %2496 = sbr.rel (0) target = $region49
    $region48: #{tpu_custom_call.1} parent=1 // pred_region
      %s2498 = ssub.s32 128, 128
      %2499 = vsyncadd [#allocation10], %s2498
      %s2501 = sshll.u32 [#allocation9], 4
      %s2502 = int_to_ptr.vmem [resolvable:$true] %s2501
      %2504 = dma.vmem_to_hbm [thread:$0]  %s2502, 128, %s8, [#allocation10]
    $region49: #{tpu_custom_call.1} parent=1 // pred_fallthru
      _
    // Predicated region
    $region50: #{tpu_custom_call.1} parent=1 // pred_check
      _
    $region51: #{tpu_custom_call.1} parent=1 // pred_check_branch
      %2506 = sbr.rel (0) target = $region53
    $region52: #{tpu_custom_call.1} parent=1 // pred_region
      %2507 = dma.done [#allocation4], 128
    $region53: #{tpu_custom_call.1} parent=1 // pred_fallthru
      _
    // Predicated region
    $region54: #{tpu_custom_call.1} parent=1 // pred_check
      _
    $region55: #{tpu_custom_call.1} parent=1 // pred_check_branch
      %2509 = sbr.rel (0) target = $region57
    $region56: #{tpu_custom_call.1} parent=1 // pred_region
      %2510 = dma.done [#allocation10], 128
    $region57: #{tpu_custom_call.1} parent=1 // pred_fallthru
      _
    %2511 = vsyncpa [#allocation3], 1
    %2512 = vsyncpa [#allocation6], 1
    %2513 = vsyncpa [#allocation4], 1
    %2514 = vsyncpa [#allocation10], 1

</llo_original>
